<compile_context>
chip_gen: v7x
topology: tpu7x:2x2x1
jax: 0.10.0
libtpu: 0.0.40
codegen_flags: <defaults>
</compile_context>

<pallas_src>
import functools

import jax
import jax.numpy as jnp
from jax import lax
from jax.experimental import pallas as pl
from jax.experimental.pallas import tpu as pltpu


# ---------------- fused Pallas kernel ----------------

_VMEM_SPEC = pl.BlockSpec(memory_space=pltpu.MemorySpace.VMEM)


def fused_rnn_fc_kernel(num_layers, seq_len, x_ref, *refs):
    """Fused multi-layer tanh-RNN + Linear head.

    x_ref:   (T*Bp, I) f32  time-major flattened input (row t*Bp+b = sample b at step t)
    refs:    per layer l: wih_l (K_l, Hp) bf16, whh_l (Hp, Hp) bf16, b_l (1, Hp) f32
             then fc_w (Hp, Op) bf16, fc_b (1, Op) f32
             then out_ref (Bp, Op) f32
             then scratch: seq (T*Bp, Hp) bf16
    """
    nw = 3 * num_layers
    layer_refs = refs[:nw]
    fcw_ref, fcb_ref, out_ref, seq_ref = refs[nw:nw + 4]

    T = seq_len
    TBp, Hp = seq_ref.shape
    Bp = TBp // T

    h_last = None
    for layer in range(num_layers):
        wih_ref = layer_refs[3 * layer + 0]
        whh_ref = layer_refs[3 * layer + 1]
        b_ref = layer_refs[3 * layer + 2]
        is_last = layer == num_layers - 1

        # (1) Hoisted input projection: one big bf16 MXU matmul for all T steps,
        #     f32 accumulation, stored back as bf16 pre-activations.
        #     NOTE: padded *batch rows* pick up the broadcast bias and evolve as
        #     tanh(b + ...); they are sliced off in the wrapper, so this is wasted
        #     compute only, not a correctness issue.  Padded *hidden lanes* stay
        #     exactly 0 (zero weight columns, zero bias).
        inp = x_ref[...].astype(jnp.bfloat16) if layer == 0 else seq_ref[...]
        pre = (jnp.dot(inp, wih_ref[...], preferred_element_type=jnp.float32)
               + b_ref[...])
        seq_ref[...] = pre.astype(seq_ref.dtype)

        # (2) Serial recurrence.  h is carried in vregs (f32) as the fori_loop carry:
        #     no per-step VMEM round trip for the hidden state.  The final layer
        #     skips the seq writeback entirely.
        def step(t, h, whh_ref=whh_ref, is_last=is_last):
            row = pl.multiple_of(t * Bp, 16)   # bf16 tile-aligned (Bp is a mult. of 16)
            h_new = jnp.tanh(
                seq_ref[pl.ds(row, Bp), :].astype(jnp.float32)
                + jnp.dot(h.astype(jnp.bfloat16), whh_ref[...],
                          preferred_element_type=jnp.float32)
            )
            if not is_last:
                # Overwrite the pre-activation slot with the hidden state: it is the
                # next layer's input sequence, so no extra scratch is needed.
                seq_ref[pl.ds(row, Bp), :] = h_new.astype(seq_ref.dtype)
            return h_new

        h_last = lax.fori_loop(0, T, step, jnp.zeros((Bp, Hp), jnp.float32),
                               unroll=min(T, 8))

    # (3) Fused fc head on the last hidden state of the last layer.
    out_ref[...] = (
        jnp.dot(h_last.astype(jnp.bfloat16), fcw_ref[...],
                preferred_element_type=jnp.float32)
        + fcb_ref[...]
    )


@functools.partial(jax.jit, static_argnames=("dims",))
def _fused_forward(x_tm, flat_weights, dims):
    num_layers, T, Bp, Hp, Op, I = dims
    kernel = functools.partial(fused_rnn_fc_kernel, num_layers, T)

    flops = 0
    for l in range(num_layers):
        k = I if l == 0 else Hp
        flops += 2 * T * Bp * Hp * (k + Hp)      # input projection + recurrence
    flops += 2 * Bp * Hp * Op                    # fc head
    bytes_accessed = int(
        x_tm.size * x_tm.dtype.itemsize
        + sum(int(w.size) * w.dtype.itemsize for w in flat_weights)
        + Bp * Op * 4)
    cost = pl.CostEstimate(flops=flops,
                           transcendentals=num_layers * T * Bp * Hp,
                           bytes_accessed=bytes_accessed)

    # Scoped-VMEM budget for the grid-less, fully VMEM-resident design:
    # inputs/out + bf16 seq scratch + one f32 projection temporary + headroom.
    seq_bytes = T * Bp * Hp * 2
    transient_bytes = T * Bp * Hp * 4
    vmem_limit = bytes_accessed + seq_bytes + transient_bytes + (4 << 20)
    vmem_limit = int(min(max(vmem_limit, 8 << 20), 64 << 20))

    return pl.pallas_call(
        kernel,
        out_shape=jax.ShapeDtypeStruct((Bp, Op), jnp.float32),
        in_specs=[_VMEM_SPEC] * (1 + len(flat_weights)),
        out_specs=_VMEM_SPEC,
        scratch_shapes=[
            pltpu.VMEM((T * Bp, Hp), jnp.bfloat16),   # per-layer sequence buffer
        ],
        compiler_params=pltpu.CompilerParams(vmem_limit_bytes=vmem_limit),
        cost_estimate=cost,
    )(x_tm, *flat_weights)


# ---------------- wrappers / parameter handling ----------------


def _round_up(n, m):
    return (n + m - 1) // m * m


def init_params(key, input_size, hidden_size, num_layers, output_size):
    """PyTorch-layout parameters (w_ih (H,in), w_hh (H,H), b_ih, b_hh; fc (O,H),(O,))."""
    k = 1.0 / (hidden_size ** 0.5)
    rnn = []
    for l in range(num_layers):
        in_sz = input_size if l == 0 else hidden_size
        key, k1, k2, k3, k4 = jax.random.split(key, 5)
        w_ih = jax.random.uniform(k1, (hidden_size, in_sz), jnp.float32, -k, k)
        w_hh = jax.random.uniform(k2, (hidden_size, hidden_size), jnp.float32, -k, k)
        b_ih = jax.random.uniform(k3, (hidden_size,), jnp.float32, -k, k)
        b_hh = jax.random.uniform(k4, (hidden_size,), jnp.float32, -k, k)
        rnn.append((w_ih, w_hh, b_ih, b_hh))
    key, k1, k2 = jax.random.split(key, 3)
    fc_w = jax.random.uniform(k1, (output_size, hidden_size), jnp.float32, -k, k)
    fc_b = jax.random.uniform(k2, (output_size,), jnp.float32, -k, k)
    return {"rnn": rnn, "fc_w": fc_w, "fc_b": fc_b}


def pad_params(params, batch_size):
    """Transpose to (in,out) layout, cast matmul weights to bf16, and zero-pad to
    (16,128)-friendly shapes (batch to 16 so bf16-tiled seq slices stay aligned)."""
    H = params["fc_w"].shape[1]
    O = params["fc_w"].shape[0]
    L = len(params["rnn"])
    Bp = _round_up(batch_size, 16)
    Hp = _round_up(H, 128)
    Op = _round_up(O, 128)

    flat = []
    for l, (w_ih, w_hh, b_ih, b_hh) in enumerate(params["rnn"]):
        in_sz = w_ih.shape[1]
        in_p = in_sz if l == 0 else Hp           # layer >0 consumes the padded hidden
        wih_t = (jnp.zeros((in_p, Hp), jnp.bfloat16)
                 .at[:in_sz, :H].set(w_ih.T.astype(jnp.bfloat16)))
        whh_t = (jnp.zeros((Hp, Hp), jnp.bfloat16)
                 .at[:H, :H].set(w_hh.T.astype(jnp.bfloat16)))
        b = jnp.zeros((1, Hp), jnp.float32).at[0, :H].set(b_ih + b_hh)
        flat += [wih_t, whh_t, b]
    fcw_t = (jnp.zeros((Hp, Op), jnp.bfloat16)
             .at[:H, :O].set(params["fc_w"].T.astype(jnp.bfloat16)))
    fcb = jnp.zeros((1, Op), jnp.float32).at[0, :O].set(params["fc_b"])
    flat += [fcw_t, fcb]

    return {"flat": tuple(flat), "Bp": Bp, "Hp": Hp, "Op": Op,
            "H": H, "O": O, "L": L}


def rnn_forward(x, padded):
    """x: (B, T, I) float32, batch-first like the PyTorch module."""
    B, T, I = x.shape
    Bp, Hp, Op, O, L = (padded["Bp"], padded["Hp"], padded["Op"],
                        padded["O"], padded["L"])
    x_p = jnp.pad(x, ((0, Bp - B), (0, 0), (0, 0)))              # pad batch rows
    x_tm = jnp.transpose(x_p, (1, 0, 2)).reshape(T * Bp, I)      # time-major, flattened
    out_p = _fused_forward(x_tm, padded["flat"], (L, T, Bp, Hp, Op, I))
    return out_p[:B, :O]


# ---------------- pure-JAX reference (same math as nn.RNN + Linear, f32) ----------------


def rnn_forward_ref(x, params):
    B = x.shape[0]
    seq = x
    for (w_ih, w_hh, b_ih, b_hh) in params["rnn"]:
        H = w_hh.shape[0]
        h = jnp.zeros((B, H), jnp.float32)
        outs = []
        for t in range(seq.shape[1]):
            h = jnp.tanh(seq[:, t, :] @ w_ih.T + h @ w_hh.T + b_ih + b_hh)
            outs.append(h)
        seq = jnp.stack(outs, axis=1)
    return seq[:, -1, :] @ params["fc_w"].T + params["fc_b"]


# ---------------- main ----------------

if __name__ == "__main__":
    # Small shapes consistent with the module's forward: x (batch, seq, input_size)
    B, T, I, H, L, O = 2, 8, 16, 32, 2, 10

    key = jax.random.PRNGKey(0)
    key, kx = jax.random.split(key)
    x = jax.random.normal(kx, (B, T, I), jnp.float32)

    torch_params = init_params(key, input_size=I, hidden_size=H,
                               num_layers=L, output_size=O)
    padded = pad_params(torch_params, batch_size=B)

    out = rnn_forward(x, padded)
    out = jax.block_until_ready(out)

    ref = rnn_forward_ref(x, torch_params)
    assert out.shape == (B, O)
    # bf16 weight/activation storage with f32 accumulation => looser tolerance than
    # the full-f32 reference (per the perf-review correctness note).
    max_err = float(jnp.max(jnp.abs(out - ref)))
    assert max_err < 5e-2, f"mismatch vs. pure-JAX reference (max abs err {max_err})"

    print("KERNEL_OK")
</pallas_src>

<mosaic_0001>
module attributes {stable_mosaic.version = 11 : i64} {
  func.func @fused_rnn_fc_kernel(%arg0: memref<128x16xf32, #tpu.memory_space<vmem>>, %arg1: memref<16x128xbf16, #tpu.memory_space<vmem>>, %arg2: memref<128x128xbf16, #tpu.memory_space<vmem>>, %arg3: memref<1x128xf32, #tpu.memory_space<vmem>>, %arg4: memref<128x128xbf16, #tpu.memory_space<vmem>>, %arg5: memref<128x128xbf16, #tpu.memory_space<vmem>>, %arg6: memref<1x128xf32, #tpu.memory_space<vmem>>, %arg7: memref<128x128xbf16, #tpu.memory_space<vmem>>, %arg8: memref<1x128xf32, #tpu.memory_space<vmem>>, %arg9: memref<16x128xf32, #tpu.memory_space<vmem>>, %arg10: memref<128x128xbf16, #tpu.memory_space<vmem>>) attributes {dimension_semantics = [], scalar_prefetch = 0 : i64, scratch_operands = 1 : i64, tpu.core_type = #tpu.core_type<tc>} {
    %c0 = arith.constant 0 : index
    %c0_0 = arith.constant 0 : index
    %0 = vector.load %arg0[%c0, %c0_0] : memref<128x16xf32, #tpu.memory_space<vmem>>, vector<128x16xf32>
    %1 = arith.truncf %0 : vector<128x16xf32> to vector<128x16xbf16>
    %c0_1 = arith.constant 0 : index
    %c0_2 = arith.constant 0 : index
    %2 = vector.load %arg1[%c0_1, %c0_2] : memref<16x128xbf16, #tpu.memory_space<vmem>>, vector<16x128xbf16>
    %cst = arith.constant dense<0.000000e+00> : vector<128x128xf32>
    %3 = tpu.matmul %1, %2, %cst {dimension_numbers = #tpu.dot_dimension_numbers<[1], [0], [0], [1], [0, 0, 1, 1], [], []>} : vector<128x16xbf16>, vector<16x128xbf16>, vector<128x128xf32> -> vector<128x128xf32>
    %c0_3 = arith.constant 0 : index
    %c0_4 = arith.constant 0 : index
    %4 = vector.load %arg3[%c0_3, %c0_4] : memref<1x128xf32, #tpu.memory_space<vmem>>, vector<1x128xf32>
    %5 = vector.broadcast %4 : vector<1x128xf32> to vector<128x128xf32>
    %6 = arith.addf %3, %5 : vector<128x128xf32>
    %7 = arith.truncf %6 : vector<128x128xf32> to vector<128x128xbf16>
    %c0_5 = arith.constant 0 : index
    %c0_6 = arith.constant 0 : index
    %8 = vector.load %arg10[%c0_5, %c0_6] : memref<128x128xbf16, #tpu.memory_space<vmem>>, vector<128x128xbf16>
    tpu.vector_store %arg10[%c0_5, %c0_6], %7 {strides = array<i32>} : memref<128x128xbf16, #tpu.memory_space<vmem>>, vector<128x128xbf16>,
    %cst_7 = arith.constant 0.000000e+00 : f32
    %9 = vector.broadcast %cst_7 : f32 to vector<16x128xf32>
    %c0_i32 = arith.constant 0 : i32
    %c16_i32 = arith.constant 16 : i32
    %10 = arith.muli %c0_i32, %c16_i32 : i32
    %11 = tpu.assume_multiple %10, 16 : i32
    %12 = arith.index_cast %11 : i32 to index
    %c0_8 = arith.constant 0 : index
    %13 = vector.load %arg10[%12, %c0_8] : memref<128x128xbf16, #tpu.memory_space<vmem>>, vector<16x128xbf16>
    %14 = arith.extf %13 : vector<16x128xbf16> to vector<16x128xf32>
    %15 = arith.truncf %9 : vector<16x128xf32> to vector<16x128xbf16>
    %c0_9 = arith.constant 0 : index
    %c0_10 = arith.constant 0 : index
    %16 = vector.load %arg2[%c0_9, %c0_10] : memref<128x128xbf16, #tpu.memory_space<vmem>>, vector<128x128xbf16>
    %cst_11 = arith.constant dense<0.000000e+00> : vector<16x128xf32>
    %17 = tpu.matmul %15, %16, %cst_11 {dimension_numbers = #tpu.dot_dimension_numbers<[1], [0], [0], [1], [0, 0, 1, 1], [], []>} : vector<16x128xbf16>, vector<128x128xbf16>, vector<16x128xf32> -> vector<16x128xf32>
    %18 = arith.addf %14, %17 : vector<16x128xf32>
    %19 = math.tanh %18 : vector<16x128xf32>
    %20 = arith.truncf %19 : vector<16x128xf32> to vector<16x128xbf16>
    %21 = arith.index_cast %11 : i32 to index
    %c0_12 = arith.constant 0 : index
    %22 = vector.load %arg10[%21, %c0_12] : memref<128x128xbf16, #tpu.memory_space<vmem>>, vector<16x128xbf16>
    tpu.vector_store %arg10[%21, %c0_12], %20 {strides = array<i32>} : memref<128x128xbf16, #tpu.memory_space<vmem>>, vector<16x128xbf16>,
    %c1_i32 = arith.constant 1 : i32
    %c16_i32_13 = arith.constant 16 : i32
    %23 = arith.muli %c1_i32, %c16_i32_13 : i32
    %24 = tpu.assume_multiple %23, 16 : i32
    %25 = arith.index_cast %24 : i32 to index
    %c0_14 = arith.constant 0 : index
    %26 = vector.load %arg10[%25, %c0_14] : memref<128x128xbf16, #tpu.memory_space<vmem>>, vector<16x128xbf16>
    %27 = arith.extf %26 : vector<16x128xbf16> to vector<16x128xf32>
    %28 = arith.truncf %19 : vector<16x128xf32> to vector<16x128xbf16>
    %c0_15 = arith.constant 0 : index
    %c0_16 = arith.constant 0 : index
    %29 = vector.load %arg2[%c0_15, %c0_16] : memref<128x128xbf16, #tpu.memory_space<vmem>>, vector<128x128xbf16>
    %cst_17 = arith.constant dense<0.000000e+00> : vector<16x128xf32>
    %30 = tpu.matmul %28, %29, %cst_17 {dimension_numbers = #tpu.dot_dimension_numbers<[1], [0], [0], [1], [0, 0, 1, 1], [], []>} : vector<16x128xbf16>, vector<128x128xbf16>, vector<16x128xf32> -> vector<16x128xf32>
    %31 = arith.addf %27, %30 : vector<16x128xf32>
    %32 = math.tanh %31 : vector<16x128xf32>
    %33 = arith.truncf %32 : vector<16x128xf32> to vector<16x128xbf16>
    %34 = arith.index_cast %24 : i32 to index
    %c0_18 = arith.constant 0 : index
    %35 = vector.load %arg10[%34, %c0_18] : memref<128x128xbf16, #tpu.memory_space<vmem>>, vector<16x128xbf16>
    tpu.vector_store %arg10[%34, %c0_18], %33 {strides = array<i32>} : memref<128x128xbf16, #tpu.memory_space<vmem>>, vector<16x128xbf16>,
    %c2_i32 = arith.constant 2 : i32
    %c16_i32_19 = arith.constant 16 : i32
    %36 = arith.muli %c2_i32, %c16_i32_19 : i32
    %37 = tpu.assume_multiple %36, 16 : i32
    %38 = arith.index_cast %37 : i32 to index
    %c0_20 = arith.constant 0 : index
    %39 = vector.load %arg10[%38, %c0_20] : memref<128x128xbf16, #tpu.memory_space<vmem>>, vector<16x128xbf16>
    %40 = arith.extf %39 : vector<16x128xbf16> to vector<16x128xf32>
    %41 = arith.truncf %32 : vector<16x128xf32> to vector<16x128xbf16>
    %c0_21 = arith.constant 0 : index
    %c0_22 = arith.constant 0 : index
    %42 = vector.load %arg2[%c0_21, %c0_22] : memref<128x128xbf16, #tpu.memory_space<vmem>>, vector<128x128xbf16>
    %cst_23 = arith.constant dense<0.000000e+00> : vector<16x128xf32>
    %43 = tpu.matmul %41, %42, %cst_23 {dimension_numbers = #tpu.dot_dimension_numbers<[1], [0], [0], [1], [0, 0, 1, 1], [], []>} : vector<16x128xbf16>, vector<128x128xbf16>, vector<16x128xf32> -> vector<16x128xf32>
    %44 = arith.addf %40, %43 : vector<16x128xf32>
    %45 = math.tanh %44 : vector<16x128xf32>
    %46 = arith.truncf %45 : vector<16x128xf32> to vector<16x128xbf16>
    %47 = arith.index_cast %37 : i32 to index
    %c0_24 = arith.constant 0 : index
    %48 = vector.load %arg10[%47, %c0_24] : memref<128x128xbf16, #tpu.memory_space<vmem>>, vector<16x128xbf16>
    tpu.vector_store %arg10[%47, %c0_24], %46 {strides = array<i32>} : memref<128x128xbf16, #tpu.memory_space<vmem>>, vector<16x128xbf16>,
    %c3_i32 = arith.constant 3 : i32
    %c16_i32_25 = arith.constant 16 : i32
    %49 = arith.muli %c3_i32, %c16_i32_25 : i32
    %50 = tpu.assume_multiple %49, 16 : i32
    %51 = arith.index_cast %50 : i32 to index
    %c0_26 = arith.constant 0 : index
    %52 = vector.load %arg10[%51, %c0_26] : memref<128x128xbf16, #tpu.memory_space<vmem>>, vector<16x128xbf16>
    %53 = arith.extf %52 : vector<16x128xbf16> to vector<16x128xf32>
    %54 = arith.truncf %45 : vector<16x128xf32> to vector<16x128xbf16>
    %c0_27 = arith.constant 0 : index
    %c0_28 = arith.constant 0 : index
    %55 = vector.load %arg2[%c0_27, %c0_28] : memref<128x128xbf16, #tpu.memory_space<vmem>>, vector<128x128xbf16>
    %cst_29 = arith.constant dense<0.000000e+00> : vector<16x128xf32>
    %56 = tpu.matmul %54, %55, %cst_29 {dimension_numbers = #tpu.dot_dimension_numbers<[1], [0], [0], [1], [0, 0, 1, 1], [], []>} : vector<16x128xbf16>, vector<128x128xbf16>, vector<16x128xf32> -> vector<16x128xf32>
    %57 = arith.addf %53, %56 : vector<16x128xf32>
    %58 = math.tanh %57 : vector<16x128xf32>
    %59 = arith.truncf %58 : vector<16x128xf32> to vector<16x128xbf16>
    %60 = arith.index_cast %50 : i32 to index
    %c0_30 = arith.constant 0 : index
    %61 = vector.load %arg10[%60, %c0_30] : memref<128x128xbf16, #tpu.memory_space<vmem>>, vector<16x128xbf16>
    tpu.vector_store %arg10[%60, %c0_30], %59 {strides = array<i32>} : memref<128x128xbf16, #tpu.memory_space<vmem>>, vector<16x128xbf16>,
    %c4_i32 = arith.constant 4 : i32
    %c16_i32_31 = arith.constant 16 : i32
    %62 = arith.muli %c4_i32, %c16_i32_31 : i32
    %63 = tpu.assume_multiple %62, 16 : i32
    %64 = arith.index_cast %63 : i32 to index
    %c0_32 = arith.constant 0 : index
    %65 = vector.load %arg10[%64, %c0_32] : memref<128x128xbf16, #tpu.memory_space<vmem>>, vector<16x128xbf16>
    %66 = arith.extf %65 : vector<16x128xbf16> to vector<16x128xf32>
    %67 = arith.truncf %58 : vector<16x128xf32> to vector<16x128xbf16>
    %c0_33 = arith.constant 0 : index
    %c0_34 = arith.constant 0 : index
    %68 = vector.load %arg2[%c0_33, %c0_34] : memref<128x128xbf16, #tpu.memory_space<vmem>>, vector<128x128xbf16>
    %cst_35 = arith.constant dense<0.000000e+00> : vector<16x128xf32>
    %69 = tpu.matmul %67, %68, %cst_35 {dimension_numbers = #tpu.dot_dimension_numbers<[1], [0], [0], [1], [0, 0, 1, 1], [], []>} : vector<16x128xbf16>, vector<128x128xbf16>, vector<16x128xf32> -> vector<16x128xf32>
    %70 = arith.addf %66, %69 : vector<16x128xf32>
    %71 = math.tanh %70 : vector<16x128xf32>
    %72 = arith.truncf %71 : vector<16x128xf32> to vector<16x128xbf16>
    %73 = arith.index_cast %63 : i32 to index
    %c0_36 = arith.constant 0 : index
    %74 = vector.load %arg10[%73, %c0_36] : memref<128x128xbf16, #tpu.memory_space<vmem>>, vector<16x128xbf16>
    tpu.vector_store %arg10[%73, %c0_36], %72 {strides = array<i32>} : memref<128x128xbf16, #tpu.memory_space<vmem>>, vector<16x128xbf16>,
    %c5_i32 = arith.constant 5 : i32
    %c16_i32_37 = arith.constant 16 : i32
    %75 = arith.muli %c5_i32, %c16_i32_37 : i32
    %76 = tpu.assume_multiple %75, 16 : i32
    %77 = arith.index_cast %76 : i32 to index
    %c0_38 = arith.constant 0 : index
    %78 = vector.load %arg10[%77, %c0_38] : memref<128x128xbf16, #tpu.memory_space<vmem>>, vector<16x128xbf16>
    %79 = arith.extf %78 : vector<16x128xbf16> to vector<16x128xf32>
    %80 = arith.truncf %71 : vector<16x128xf32> to vector<16x128xbf16>
    %c0_39 = arith.constant 0 : index
    %c0_40 = arith.constant 0 : index
    %81 = vector.load %arg2[%c0_39, %c0_40] : memref<128x128xbf16, #tpu.memory_space<vmem>>, vector<128x128xbf16>
    %cst_41 = arith.constant dense<0.000000e+00> : vector<16x128xf32>
    %82 = tpu.matmul %80, %81, %cst_41 {dimension_numbers = #tpu.dot_dimension_numbers<[1], [0], [0], [1], [0, 0, 1, 1], [], []>} : vector<16x128xbf16>, vector<128x128xbf16>, vector<16x128xf32> -> vector<16x128xf32>
    %83 = arith.addf %79, %82 : vector<16x128xf32>
    %84 = math.tanh %83 : vector<16x128xf32>
    %85 = arith.truncf %84 : vector<16x128xf32> to vector<16x128xbf16>
    %86 = arith.index_cast %76 : i32 to index
    %c0_42 = arith.constant 0 : index
    %87 = vector.load %arg10[%86, %c0_42] : memref<128x128xbf16, #tpu.memory_space<vmem>>, vector<16x128xbf16>
    tpu.vector_store %arg10[%86, %c0_42], %85 {strides = array<i32>} : memref<128x128xbf16, #tpu.memory_space<vmem>>, vector<16x128xbf16>,
    %c6_i32 = arith.constant 6 : i32
    %c16_i32_43 = arith.constant 16 : i32
    %88 = arith.muli %c6_i32, %c16_i32_43 : i32
    %89 = tpu.assume_multiple %88, 16 : i32
    %90 = arith.index_cast %89 : i32 to index
    %c0_44 = arith.constant 0 : index
    %91 = vector.load %arg10[%90, %c0_44] : memref<128x128xbf16, #tpu.memory_space<vmem>>, vector<16x128xbf16>
    %92 = arith.extf %91 : vector<16x128xbf16> to vector<16x128xf32>
    %93 = arith.truncf %84 : vector<16x128xf32> to vector<16x128xbf16>
    %c0_45 = arith.constant 0 : index
    %c0_46 = arith.constant 0 : index
    %94 = vector.load %arg2[%c0_45, %c0_46] : memref<128x128xbf16, #tpu.memory_space<vmem>>, vector<128x128xbf16>
    %cst_47 = arith.constant dense<0.000000e+00> : vector<16x128xf32>
    %95 = tpu.matmul %93, %94, %cst_47 {dimension_numbers = #tpu.dot_dimension_numbers<[1], [0], [0], [1], [0, 0, 1, 1], [], []>} : vector<16x128xbf16>, vector<128x128xbf16>, vector<16x128xf32> -> vector<16x128xf32>
    %96 = arith.addf %92, %95 : vector<16x128xf32>
    %97 = math.tanh %96 : vector<16x128xf32>
    %98 = arith.truncf %97 : vector<16x128xf32> to vector<16x128xbf16>
    %99 = arith.index_cast %89 : i32 to index
    %c0_48 = arith.constant 0 : index
    %100 = vector.load %arg10[%99, %c0_48] : memref<128x128xbf16, #tpu.memory_space<vmem>>, vector<16x128xbf16>
    tpu.vector_store %arg10[%99, %c0_48], %98 {strides = array<i32>} : memref<128x128xbf16, #tpu.memory_space<vmem>>, vector<16x128xbf16>,
    %c7_i32 = arith.constant 7 : i32
    %c16_i32_49 = arith.constant 16 : i32
    %101 = arith.muli %c7_i32, %c16_i32_49 : i32
    %102 = tpu.assume_multiple %101, 16 : i32
    %103 = arith.index_cast %102 : i32 to index
    %c0_50 = arith.constant 0 : index
    %104 = vector.load %arg10[%103, %c0_50] : memref<128x128xbf16, #tpu.memory_space<vmem>>, vector<16x128xbf16>
    %105 = arith.extf %104 : vector<16x128xbf16> to vector<16x128xf32>
    %106 = arith.truncf %97 : vector<16x128xf32> to vector<16x128xbf16>
    %c0_51 = arith.constant 0 : index
    %c0_52 = arith.constant 0 : index
    %107 = vector.load %arg2[%c0_51, %c0_52] : memref<128x128xbf16, #tpu.memory_space<vmem>>, vector<128x128xbf16>
    %cst_53 = arith.constant dense<0.000000e+00> : vector<16x128xf32>
    %108 = tpu.matmul %106, %107, %cst_53 {dimension_numbers = #tpu.dot_dimension_numbers<[1], [0], [0], [1], [0, 0, 1, 1], [], []>} : vector<16x128xbf16>, vector<128x128xbf16>, vector<16x128xf32> -> vector<16x128xf32>
    %109 = arith.addf %105, %108 : vector<16x128xf32>
    %110 = math.tanh %109 : vector<16x128xf32>
    %111 = arith.truncf %110 : vector<16x128xf32> to vector<16x128xbf16>
    %112 = arith.index_cast %102 : i32 to index
    %c0_54 = arith.constant 0 : index
    %113 = vector.load %arg10[%112, %c0_54] : memref<128x128xbf16, #tpu.memory_space<vmem>>, vector<16x128xbf16>
    tpu.vector_store %arg10[%112, %c0_54], %111 {strides = array<i32>} : memref<128x128xbf16, #tpu.memory_space<vmem>>, vector<16x128xbf16>,
    %c8_i32 = arith.constant 8 : i32
    %c0_55 = arith.constant 0 : index
    %c0_56 = arith.constant 0 : index
    %114 = vector.load %arg10[%c0_55, %c0_56] : memref<128x128xbf16, #tpu.memory_space<vmem>>, vector<128x128xbf16>
    %c0_57 = arith.constant 0 : index
    %c0_58 = arith.constant 0 : index
    %115 = vector.load %arg4[%c0_57, %c0_58] : memref<128x128xbf16, #tpu.memory_space<vmem>>, vector<128x128xbf16>
    %cst_59 = arith.constant dense<0.000000e+00> : vector<128x128xf32>
    %116 = tpu.matmul %114, %115, %cst_59 {dimension_numbers = #tpu.dot_dimension_numbers<[1], [0], [0], [1], [0, 0, 1, 1], [], []>} : vector<128x128xbf16>, vector<128x128xbf16>, vector<128x128xf32> -> vector<128x128xf32>
    %c0_60 = arith.constant 0 : index
    %c0_61 = arith.constant 0 : index
    %117 = vector.load %arg6[%c0_60, %c0_61] : memref<1x128xf32, #tpu.memory_space<vmem>>, vector<1x128xf32>
    %118 = vector.broadcast %117 : vector<1x128xf32> to vector<128x128xf32>
    %119 = arith.addf %116, %118 : vector<128x128xf32>
    %120 = arith.truncf %119 : vector<128x128xf32> to vector<128x128xbf16>
    %c0_62 = arith.constant 0 : index
    %c0_63 = arith.constant 0 : index
    %121 = vector.load %arg10[%c0_62, %c0_63] : memref<128x128xbf16, #tpu.memory_space<vmem>>, vector<128x128xbf16>
    tpu.vector_store %arg10[%c0_62, %c0_63], %120 {strides = array<i32>} : memref<128x128xbf16, #tpu.memory_space<vmem>>, vector<128x128xbf16>,
    %cst_64 = arith.constant 0.000000e+00 : f32
    %122 = vector.broadcast %cst_64 : f32 to vector<16x128xf32>
    %c0_i32_65 = arith.constant 0 : i32
    %c16_i32_66 = arith.constant 16 : i32
    %123 = arith.muli %c0_i32_65, %c16_i32_66 : i32
    %124 = tpu.assume_multiple %123, 16 : i32
    %125 = arith.index_cast %124 : i32 to index
    %c0_67 = arith.constant 0 : index
    %126 = vector.load %arg10[%125, %c0_67] : memref<128x128xbf16, #tpu.memory_space<vmem>>, vector<16x128xbf16>
    %127 = arith.extf %126 : vector<16x128xbf16> to vector<16x128xf32>
    %128 = arith.truncf %122 : vector<16x128xf32> to vector<16x128xbf16>
    %c0_68 = arith.constant 0 : index
    %c0_69 = arith.constant 0 : index
    %129 = vector.load %arg5[%c0_68, %c0_69] : memref<128x128xbf16, #tpu.memory_space<vmem>>, vector<128x128xbf16>
    %cst_70 = arith.constant dense<0.000000e+00> : vector<16x128xf32>
    %130 = tpu.matmul %128, %129, %cst_70 {dimension_numbers = #tpu.dot_dimension_numbers<[1], [0], [0], [1], [0, 0, 1, 1], [], []>} : vector<16x128xbf16>, vector<128x128xbf16>, vector<16x128xf32> -> vector<16x128xf32>
    %131 = arith.addf %127, %130 : vector<16x128xf32>
    %132 = math.tanh %131 : vector<16x128xf32>
    %c1_i32_71 = arith.constant 1 : i32
    %c16_i32_72 = arith.constant 16 : i32
    %133 = arith.muli %c1_i32_71, %c16_i32_72 : i32
    %134 = tpu.assume_multiple %133, 16 : i32
    %135 = arith.index_cast %134 : i32 to index
    %c0_73 = arith.constant 0 : index
    %136 = vector.load %arg10[%135, %c0_73] : memref<128x128xbf16, #tpu.memory_space<vmem>>, vector<16x128xbf16>
    %137 = arith.extf %136 : vector<16x128xbf16> to vector<16x128xf32>
    %138 = arith.truncf %132 : vector<16x128xf32> to vector<16x128xbf16>
    %c0_74 = arith.constant 0 : index
    %c0_75 = arith.constant 0 : index
    %139 = vector.load %arg5[%c0_74, %c0_75] : memref<128x128xbf16, #tpu.memory_space<vmem>>, vector<128x128xbf16>
    %cst_76 = arith.constant dense<0.000000e+00> : vector<16x128xf32>
    %140 = tpu.matmul %138, %139, %cst_76 {dimension_numbers = #tpu.dot_dimension_numbers<[1], [0], [0], [1], [0, 0, 1, 1], [], []>} : vector<16x128xbf16>, vector<128x128xbf16>, vector<16x128xf32> -> vector<16x128xf32>
    %141 = arith.addf %137, %140 : vector<16x128xf32>
    %142 = math.tanh %141 : vector<16x128xf32>
    %c2_i32_77 = arith.constant 2 : i32
    %c16_i32_78 = arith.constant 16 : i32
    %143 = arith.muli %c2_i32_77, %c16_i32_78 : i32
    %144 = tpu.assume_multiple %143, 16 : i32
    %145 = arith.index_cast %144 : i32 to index
    %c0_79 = arith.constant 0 : index
    %146 = vector.load %arg10[%145, %c0_79] : memref<128x128xbf16, #tpu.memory_space<vmem>>, vector<16x128xbf16>
    %147 = arith.extf %146 : vector<16x128xbf16> to vector<16x128xf32>
    %148 = arith.truncf %142 : vector<16x128xf32> to vector<16x128xbf16>
    %c0_80 = arith.constant 0 : index
    %c0_81 = arith.constant 0 : index
    %149 = vector.load %arg5[%c0_80, %c0_81] : memref<128x128xbf16, #tpu.memory_space<vmem>>, vector<128x128xbf16>
    %cst_82 = arith.constant dense<0.000000e+00> : vector<16x128xf32>
    %150 = tpu.matmul %148, %149, %cst_82 {dimension_numbers = #tpu.dot_dimension_numbers<[1], [0], [0], [1], [0, 0, 1, 1], [], []>} : vector<16x128xbf16>, vector<128x128xbf16>, vector<16x128xf32> -> vector<16x128xf32>
    %151 = arith.addf %147, %150 : vector<16x128xf32>
    %152 = math.tanh %151 : vector<16x128xf32>
    %c3_i32_83 = arith.constant 3 : i32
    %c16_i32_84 = arith.constant 16 : i32
    %153 = arith.muli %c3_i32_83, %c16_i32_84 : i32
    %154 = tpu.assume_multiple %153, 16 : i32
    %155 = arith.index_cast %154 : i32 to index
    %c0_85 = arith.constant 0 : index
    %156 = vector.load %arg10[%155, %c0_85] : memref<128x128xbf16, #tpu.memory_space<vmem>>, vector<16x128xbf16>
    %157 = arith.extf %156 : vector<16x128xbf16> to vector<16x128xf32>
    %158 = arith.truncf %152 : vector<16x128xf32> to vector<16x128xbf16>
    %c0_86 = arith.constant 0 : index
    %c0_87 = arith.constant 0 : index
    %159 = vector.load %arg5[%c0_86, %c0_87] : memref<128x128xbf16, #tpu.memory_space<vmem>>, vector<128x128xbf16>
    %cst_88 = arith.constant dense<0.000000e+00> : vector<16x128xf32>
    %160 = tpu.matmul %158, %159, %cst_88 {dimension_numbers = #tpu.dot_dimension_numbers<[1], [0], [0], [1], [0, 0, 1, 1], [], []>} : vector<16x128xbf16>, vector<128x128xbf16>, vector<16x128xf32> -> vector<16x128xf32>
    %161 = arith.addf %157, %160 : vector<16x128xf32>
    %162 = math.tanh %161 : vector<16x128xf32>
    %c4_i32_89 = arith.constant 4 : i32
    %c16_i32_90 = arith.constant 16 : i32
    %163 = arith.muli %c4_i32_89, %c16_i32_90 : i32
    %164 = tpu.assume_multiple %163, 16 : i32
    %165 = arith.index_cast %164 : i32 to index
    %c0_91 = arith.constant 0 : index
    %166 = vector.load %arg10[%165, %c0_91] : memref<128x128xbf16, #tpu.memory_space<vmem>>, vector<16x128xbf16>
    %167 = arith.extf %166 : vector<16x128xbf16> to vector<16x128xf32>
    %168 = arith.truncf %162 : vector<16x128xf32> to vector<16x128xbf16>
    %c0_92 = arith.constant 0 : index
    %c0_93 = arith.constant 0 : index
    %169 = vector.load %arg5[%c0_92, %c0_93] : memref<128x128xbf16, #tpu.memory_space<vmem>>, vector<128x128xbf16>
    %cst_94 = arith.constant dense<0.000000e+00> : vector<16x128xf32>
    %170 = tpu.matmul %168, %169, %cst_94 {dimension_numbers = #tpu.dot_dimension_numbers<[1], [0], [0], [1], [0, 0, 1, 1], [], []>} : vector<16x128xbf16>, vector<128x128xbf16>, vector<16x128xf32> -> vector<16x128xf32>
    %171 = arith.addf %167, %170 : vector<16x128xf32>
    %172 = math.tanh %171 : vector<16x128xf32>
    %c5_i32_95 = arith.constant 5 : i32
    %c16_i32_96 = arith.constant 16 : i32
    %173 = arith.muli %c5_i32_95, %c16_i32_96 : i32
    %174 = tpu.assume_multiple %173, 16 : i32
    %175 = arith.index_cast %174 : i32 to index
    %c0_97 = arith.constant 0 : index
    %176 = vector.load %arg10[%175, %c0_97] : memref<128x128xbf16, #tpu.memory_space<vmem>>, vector<16x128xbf16>
    %177 = arith.extf %176 : vector<16x128xbf16> to vector<16x128xf32>
    %178 = arith.truncf %172 : vector<16x128xf32> to vector<16x128xbf16>
    %c0_98 = arith.constant 0 : index
    %c0_99 = arith.constant 0 : index
    %179 = vector.load %arg5[%c0_98, %c0_99] : memref<128x128xbf16, #tpu.memory_space<vmem>>, vector<128x128xbf16>
    %cst_100 = arith.constant dense<0.000000e+00> : vector<16x128xf32>
    %180 = tpu.matmul %178, %179, %cst_100 {dimension_numbers = #tpu.dot_dimension_numbers<[1], [0], [0], [1], [0, 0, 1, 1], [], []>} : vector<16x128xbf16>, vector<128x128xbf16>, vector<16x128xf32> -> vector<16x128xf32>
    %181 = arith.addf %177, %180 : vector<16x128xf32>
    %182 = math.tanh %181 : vector<16x128xf32>
    %c6_i32_101 = arith.constant 6 : i32
    %c16_i32_102 = arith.constant 16 : i32
    %183 = arith.muli %c6_i32_101, %c16_i32_102 : i32
    %184 = tpu.assume_multiple %183, 16 : i32
    %185 = arith.index_cast %184 : i32 to index
    %c0_103 = arith.constant 0 : index
    %186 = vector.load %arg10[%185, %c0_103] : memref<128x128xbf16, #tpu.memory_space<vmem>>, vector<16x128xbf16>
    %187 = arith.extf %186 : vector<16x128xbf16> to vector<16x128xf32>
    %188 = arith.truncf %182 : vector<16x128xf32> to vector<16x128xbf16>
    %c0_104 = arith.constant 0 : index
    %c0_105 = arith.constant 0 : index
    %189 = vector.load %arg5[%c0_104, %c0_105] : memref<128x128xbf16, #tpu.memory_space<vmem>>, vector<128x128xbf16>
    %cst_106 = arith.constant dense<0.000000e+00> : vector<16x128xf32>
    %190 = tpu.matmul %188, %189, %cst_106 {dimension_numbers = #tpu.dot_dimension_numbers<[1], [0], [0], [1], [0, 0, 1, 1], [], []>} : vector<16x128xbf16>, vector<128x128xbf16>, vector<16x128xf32> -> vector<16x128xf32>
    %191 = arith.addf %187, %190 : vector<16x128xf32>
    %192 = math.tanh %191 : vector<16x128xf32>
    %c7_i32_107 = arith.constant 7 : i32
    %c16_i32_108 = arith.constant 16 : i32
    %193 = arith.muli %c7_i32_107, %c16_i32_108 : i32
    %194 = tpu.assume_multiple %193, 16 : i32
    %195 = arith.index_cast %194 : i32 to index
    %c0_109 = arith.constant 0 : index
    %196 = vector.load %arg10[%195, %c0_109] : memref<128x128xbf16, #tpu.memory_space<vmem>>, vector<16x128xbf16>
    %197 = arith.extf %196 : vector<16x128xbf16> to vector<16x128xf32>
    %198 = arith.truncf %192 : vector<16x128xf32> to vector<16x128xbf16>
    %c0_110 = arith.constant 0 : index
    %c0_111 = arith.constant 0 : index
    %199 = vector.load %arg5[%c0_110, %c0_111] : memref<128x128xbf16, #tpu.memory_space<vmem>>, vector<128x128xbf16>
    %cst_112 = arith.constant dense<0.000000e+00> : vector<16x128xf32>
    %200 = tpu.matmul %198, %199, %cst_112 {dimension_numbers = #tpu.dot_dimension_numbers<[1], [0], [0], [1], [0, 0, 1, 1], [], []>} : vector<16x128xbf16>, vector<128x128xbf16>, vector<16x128xf32> -> vector<16x128xf32>
    %201 = arith.addf %197, %200 : vector<16x128xf32>
    %202 = math.tanh %201 : vector<16x128xf32>
    %c8_i32_113 = arith.constant 8 : i32
    %203 = arith.truncf %202 : vector<16x128xf32> to vector<16x128xbf16>
    %c0_114 = arith.constant 0 : index
    %c0_115 = arith.constant 0 : index
    %204 = vector.load %arg7[%c0_114, %c0_115] : memref<128x128xbf16, #tpu.memory_space<vmem>>, vector<128x128xbf16>
    %cst_116 = arith.constant dense<0.000000e+00> : vector<16x128xf32>
    %205 = tpu.matmul %203, %204, %cst_116 {dimension_numbers = #tpu.dot_dimension_numbers<[1], [0], [0], [1], [0, 0, 1, 1], [], []>} : vector<16x128xbf16>, vector<128x128xbf16>, vector<16x128xf32> -> vector<16x128xf32>
    %c0_117 = arith.constant 0 : index
    %c0_118 = arith.constant 0 : index
    %206 = vector.load %arg8[%c0_117, %c0_118] : memref<1x128xf32, #tpu.memory_space<vmem>>, vector<1x128xf32>
    %207 = vector.broadcast %206 : vector<1x128xf32> to vector<16x128xf32>
    %208 = arith.addf %205, %207 : vector<16x128xf32>
    %c0_119 = arith.constant 0 : index
    %c0_120 = arith.constant 0 : index
    %209 = vector.load %arg9[%c0_119, %c0_120] : memref<16x128xf32, #tpu.memory_space<vmem>>, vector<16x128xf32>
    tpu.vector_store %arg9[%c0_119, %c0_120], %208 {strides = array<i32>} : memref<16x128xf32, #tpu.memory_space<vmem>>, vector<16x128xf32>,
    return
  }
}

</mosaic_0001>

<llo_original>
// kernel: _fused_forward.1
$region0: #{_fused_forward.1}
  #allocation0 [shape = 'u32[]', space=smem, size = 0x4, offset = 0x4, fixed_abs, tag = 'smem constant byte address 0x4 - core index']
  #allocation1 [shape = 'u32[144,128]{1,0:T(1,128)}', space=vmem, size = 0x12000, scoped, tag = 'internal scratch']
  #allocation2 [shape = 'bf16[128,128]{1,0:T(16,128)(2,1)}', space=vmem, size = 0x8000, scoped, tag = 'scratch operand']
  %s0 = inlined_call_operand.vmem [shape: f32[128,16], index: 0, kind: input, shape index: {}]
  %s1 = inlined_call_operand.vmem [shape: bf16[16,128], index: 1, kind: input, shape index: {}]
  %s2 = inlined_call_operand.vmem [shape: bf16[128,128], index: 2, kind: input, shape index: {}]
  %s3 = inlined_call_operand.vmem [shape: f32[1,128], index: 3, kind: input, shape index: {}]
  %s4 = inlined_call_operand.vmem [shape: bf16[128,128], index: 4, kind: input, shape index: {}]
  %s5 = inlined_call_operand.hbm [shape: bf16[128,128], index: 5, kind: input, shape index: {}]
  %s6 = inlined_call_operand.vmem [shape: f32[1,128], index: 6, kind: input, shape index: {}]
  %s7 = inlined_call_operand.hbm [shape: bf16[128,128], index: 7, kind: input, shape index: {}]
  %s8 = inlined_call_operand.vmem [shape: f32[1,128], index: 8, kind: input, shape index: {}]
  %s9 = inlined_call_operand.hbm [shape: f32[16,128], index: 9, kind: output, shape index: {}]
  %s10 = sld [smem:[#allocation0]]
  $region54: #{_fused_forward.1} parent=0
    _
  %s12 = ssub.s32 1, %s10
  %s13 = scalar_select 0, %s12, %s10
  $region1: #{_fused_forward.1} parent=0
    #allocation3 [shape = 'u8[32768]{0}', space=vmem, size = 0x8000, scoped, tag = 'input window, operand 5, single buffered']
    #allocation4 [shape = 's32[1]{0}', space=sflag, size = 0x4, scoped, tag = 'scoped memory for _fused_forward.1']
    #allocation5 [shape = 's32[1]{0}', space=sflag, size = 0x4, scoped, tag = 'scoped memory for _fused_forward.1']
    #allocation6 [shape = 'u8[32768]{0}', space=vmem, size = 0x8000, scoped, tag = 'input window, operand 7, single buffered']
    #allocation7 [shape = 's32[1]{0}', space=sflag, size = 0x4, scoped, tag = 'scoped memory for _fused_forward.1']
    #allocation8 [shape = 'u8[8192]{0}', space=vmem, size = 0x2000, scoped, tag = 'output window, operand 0, single buffered']
    %14 = vsyncpa [#allocation4], 0
    %15 = vsyncpa [#allocation7], 0
    %16 = vsyncpa [#allocation5], 0
    // Predicated region
    $region2: #{_fused_forward.1} parent=1 // pred_check
      _
    $region3: #{_fused_forward.1} parent=1 // pred_check_branch
      %18 = sbr.rel (0) target = $region5
    $region4: #{_fused_forward.1} parent=1 // pred_region
      _
    $region5: #{_fused_forward.1} parent=1 // pred_fallthru
      _
    // Predicated region
    $region6: #{_fused_forward.1} parent=1 // pred_check
      _
    $region7: #{_fused_forward.1} parent=1 // pred_check_branch
      %20 = sbr.rel (0) target = $region9
    $region8: #{_fused_forward.1} parent=1 // pred_region
      _
    $region9: #{_fused_forward.1} parent=1 // pred_fallthru
      _
    // Predicated region
    $region10: #{_fused_forward.1} parent=1 // pred_check
      _
    $region11: #{_fused_forward.1} parent=1 // pred_check_branch
      %22 = sbr.rel (0) target = $region13
    $region12: #{_fused_forward.1} parent=1 // pred_region
      _
    $region13: #{_fused_forward.1} parent=1 // pred_fallthru
      _
    // Predicated region
    $region14: #{_fused_forward.1} parent=1 // pred_check
      _
    $region15: #{_fused_forward.1} parent=1 // pred_check_branch
      %24 = sbr.rel (0) target = $region17
    $region16: #{_fused_forward.1} parent=1 // pred_region
      _
    $region17: #{_fused_forward.1} parent=1 // pred_fallthru
      _
    // Predicated region
    $region18: #{_fused_forward.1} parent=1 // pred_check
      _
    $region19: #{_fused_forward.1} parent=1 // pred_check_branch
      %26 = sbr.rel (0) target = $region21
    $region20: #{_fused_forward.1} parent=1 // pred_region
      _
    $region21: #{_fused_forward.1} parent=1 // pred_fallthru
      _
    // Predicated region
    $region22: #{_fused_forward.1} parent=1 // pred_check
      _
    $region23: #{_fused_forward.1} parent=1 // pred_check_branch
      %28 = sbr.rel (0) target = $region25
    $region24: #{_fused_forward.1} parent=1 // pred_region
      %s30 = ssub.s32 1024, 1024
      %31 = vsyncadd [#allocation4], %s30
      %s32 = sshll.u32 [#allocation3], 4
      %s33 = int_to_ptr.vmem [resolvable:$true] %s32
      %38 = dma.hbm_to_vmem [thread:$0]  %s5, 1024, %s33, [#allocation4], 64, 64, 4
    $region25: #{_fused_forward.1} parent=1 // pred_fallthru
      _
    // Predicated region
    $region26: #{_fused_forward.1} parent=1 // pred_check
      _
    $region27: #{_fused_forward.1} parent=1 // pred_check_branch
      %40 = sbr.rel (0) target = $region29
    $region28: #{_fused_forward.1} parent=1 // pred_region
      _
    $region29: #{_fused_forward.1} parent=1 // pred_fallthru
      _
    // Predicated region
    $region30: #{_fused_forward.1} parent=1 // pred_check
      _
    $region31: #{_fused_forward.1} parent=1 // pred_check_branch
      %42 = sbr.rel (0) target = $region33
    $region32: #{_fused_forward.1} parent=1 // pred_region
      %s44 = ssub.s32 1024, 1024
      %45 = vsyncadd [#allocation7], %s44
      %s46 = sshll.u32 [#allocation6], 4
      %s47 = int_to_ptr.vmem [resolvable:$true] %s46
      %52 = dma.hbm_to_vmem [thread:$0]  %s7, 1024, %s47, [#allocation7], 64, 64, 4
    $region33: #{_fused_forward.1} parent=1 // pred_fallthru
      _
    // Predicated region
    $region34: #{_fused_forward.1} parent=1 // pred_check
      _
    $region35: #{_fused_forward.1} parent=1 // pred_check_branch
      %54 = sbr.rel (0) target = $region37
    $region36: #{_fused_forward.1} parent=1 // pred_region
      _
    $region37: #{_fused_forward.1} parent=1 // pred_fallthru
      _
    // Predicated region
    $region38: #{_fused_forward.1} parent=1 // pred_check
      _
    $region39: #{_fused_forward.1} parent=1 // pred_check_branch
      %56 = sbr.rel (0) target = $region41
    $region40: #{_fused_forward.1} parent=1 // pred_region
      %57 = dma.done [#allocation4], 1024
    $region41: #{_fused_forward.1} parent=1 // pred_fallthru
      _
    // Predicated region
    $region42: #{_fused_forward.1} parent=1 // pred_check
      _
    $region43: #{_fused_forward.1} parent=1 // pred_check_branch
      %59 = sbr.rel (0) target = $region45
    $region44: #{_fused_forward.1} parent=1 // pred_region
      %60 = dma.done [#allocation7], 1024
    $region45: #{_fused_forward.1} parent=1 // pred_fallthru
      _
    %v62 = vld [vmem:[%s0] sm:$0xff]
    %v63 = vld [vmem:[%s0 + $0x8] sm:$0xff]
    %v64 = vld [vmem:[%s0 + $0x10] sm:$0xff]
    %v65 = vld [vmem:[%s0 + $0x18] sm:$0xff]
    %v66 = vld [vmem:[%s0 + $0x20] sm:$0xff]
    %v67 = vld [vmem:[%s0 + $0x28] sm:$0xff]
    %v68 = vld [vmem:[%s0 + $0x30] sm:$0xff]
    %v69 = vld [vmem:[%s0 + $0x38] sm:$0xff]
    %v70 = vld [vmem:[%s0 + $0x40] sm:$0xff]
    %v71 = vld [vmem:[%s0 + $0x48] sm:$0xff]
    %v72 = vld [vmem:[%s0 + $0x50] sm:$0xff]
    %v73 = vld [vmem:[%s0 + $0x58] sm:$0xff]
    %v74 = vld [vmem:[%s0 + $0x60] sm:$0xff]
    %v75 = vld [vmem:[%s0 + $0x68] sm:$0xff]
    %v76 = vld [vmem:[%s0 + $0x70] sm:$0xff]
    %v77 = vld [vmem:[%s0 + $0x78] sm:$0xff]
    %v78 = vpack.c.bf16 %v63, %v62
    %v79 = vpack.c.bf16 %v65, %v64
    %v80 = vpack.c.bf16 %v67, %v66
    %v81 = vpack.c.bf16 %v69, %v68
    %v82 = vpack.c.bf16 %v71, %v70
    %v83 = vpack.c.bf16 %v73, %v72
    %v84 = vpack.c.bf16 %v75, %v74
    %v85 = vpack.c.bf16 %v77, %v76
    %v86 = vld [vmem:[%s1] sm:$0xf]
    %v87 = vld [vmem:[%s1 + $0x4] sm:$0xf]
    %v88 = vld [vmem:[%s3] sm:$0x1]
    %v90 = vlaneseq
    %v91 = vshrl.u32 %v90, 7
    %v92 = vsub.s32 0, %v91
    %v93 = vrot.slane %v88, %v92
    %v97 = vunpack.c.l.b16 %v86
    %v98 = vunpack.c.l.b16 %v87
    %v99 = vpack.c.b16 %v98, %v97
    %vm101 = vcmask 130048
    %v103 = vsel %vm101, %v78, 0
    %v106 = vsel %vm101, %v79, 0
    %v109 = vsel %vm101, %v80, 0
    %v112 = vsel %vm101, %v81, 0
    %v115 = vsel %vm101, %v82, 0
    %v118 = vsel %vm101, %v83, 0
    %v121 = vsel %vm101, %v84, 0
    %v124 = vsel %vm101, %v85, 0
    %126 = vmatprep.subr.bf16.mxu0 0
    %127 = vmatpush1.bf16.msra.mxu0 %v99
    %128 = vmatprep.subr.bf16.mxu0 0
    %129 = vmatpush1.bf16.msra.mxu0 0
    %130 = vmatprep.subr.bf16.mxu0 0
    %131 = vmatpush1.bf16.msra.mxu0 0
    %132 = vmatprep.subr.bf16.mxu0 0
    %133 = vmatpush1.bf16.msra.mxu0 0
    %134 = vmatprep.subr.bf16.mxu0 0
    %135 = vmatpush1.bf16.msra.mxu0 0
    %136 = vmatprep.subr.bf16.mxu0 0
    %137 = vmatpush1.bf16.msra.mxu0 0
    %138 = vmatprep.subr.bf16.mxu0 0
    %139 = vmatpush1.bf16.msra.mxu0 0
    %140 = vmatprep.subr.bf16.mxu0 0
    %141 = vmatpush1.bf16.msra.mxu0 0
    %142 = vmatprep.subr.bf16.mxu0 0
    %143 = vmatpush1.bf16.msra.mxu0 0
    %144 = vmatprep.subr.bf16.mxu0 0
    %145 = vmatpush1.bf16.msra.mxu0 0
    %146 = vmatprep.subr.bf16.mxu0 0
    %147 = vmatpush1.bf16.msra.mxu0 0
    %148 = vmatprep.subr.bf16.mxu0 0
    %149 = vmatpush1.bf16.msra.mxu0 0
    %150 = vmatprep.subr.bf16.mxu0 0
    %151 = vmatpush1.bf16.msra.mxu0 0
    %152 = vmatprep.subr.bf16.mxu0 0
    %153 = vmatpush1.bf16.msra.mxu0 0
    %154 = vmatprep.subr.bf16.mxu0 0
    %155 = vmatpush1.bf16.msra.mxu0 0
    %156 = vmatprep.subr.bf16.mxu0 0
    %157 = vmatpush1.bf16.msra.mxu0 0
    %158 = vmatprep.mubr.bf16.mxu0 0
    %159 = vmatmul.mubr.bf16.gmra.mrb[0].mxu0 %v103
    %v160 = vpop.f32.mrb[0].mxu0
    %v161 = vadd.f32 %v93, %v160
    %v162 = vpop.f32.mrb[0].mxu0
    %v163 = vpop.f32.mrb[0].mxu0
    %v164 = vadd.f32 %v93, %v163
    %v165 = vpop.f32.mrb[0].mxu0
    %166 = vmatprep.mubr.bf16.mxu0 0
    %167 = vmatmul.mubr.bf16.gmra.mrb[0].mxu0 %v106
    %v168 = vpop.f32.mrb[0].mxu0
    %v169 = vadd.f32 %v93, %v168
    %v170 = vpop.f32.mrb[0].mxu0
    %v171 = vpop.f32.mrb[0].mxu0
    %v172 = vadd.f32 %v93, %v171
    %v173 = vpop.f32.mrb[0].mxu0
    %174 = vmatprep.mubr.bf16.mxu0 0
    %175 = vmatmul.mubr.bf16.gmra.mrb[0].mxu0 %v109
    %v176 = vpop.f32.mrb[0].mxu0
    %v177 = vadd.f32 %v93, %v176
    %v178 = vpop.f32.mrb[0].mxu0
    %v179 = vpop.f32.mrb[0].mxu0
    %v180 = vadd.f32 %v93, %v179
    %v181 = vpop.f32.mrb[0].mxu0
    %182 = vmatprep.mubr.bf16.mxu0 0
    %183 = vmatmul.mubr.bf16.gmra.mrb[0].mxu0 %v112
    %v184 = vpop.f32.mrb[0].mxu0
    %v185 = vadd.f32 %v93, %v184
    %v186 = vpop.f32.mrb[0].mxu0
    %v187 = vpop.f32.mrb[0].mxu0
    %v188 = vadd.f32 %v93, %v187
    %v189 = vpop.f32.mrb[0].mxu0
    %190 = vmatprep.mubr.bf16.mxu0 0
    %191 = vmatmul.mubr.bf16.gmra.mrb[0].mxu0 %v115
    %v192 = vpop.f32.mrb[0].mxu0
    %v193 = vadd.f32 %v93, %v192
    %v194 = vpop.f32.mrb[0].mxu0
    %v195 = vpop.f32.mrb[0].mxu0
    %v196 = vadd.f32 %v93, %v195
    %v197 = vpop.f32.mrb[0].mxu0
    %198 = vmatprep.mubr.bf16.mxu0 0
    %199 = vmatmul.mubr.bf16.gmra.mrb[0].mxu0 %v118
    %v200 = vpop.f32.mrb[0].mxu0
    %v201 = vadd.f32 %v93, %v200
    %v202 = vpop.f32.mrb[0].mxu0
    %v203 = vpop.f32.mrb[0].mxu0
    %v204 = vadd.f32 %v93, %v203
    %v205 = vpop.f32.mrb[0].mxu0
    %206 = vmatprep.mubr.bf16.mxu0 0
    %207 = vmatmul.mubr.bf16.gmra.mrb[0].mxu0 %v121
    %v208 = vpop.f32.mrb[0].mxu0
    %v209 = vadd.f32 %v93, %v208
    %v210 = vpop.f32.mrb[0].mxu0
    %v211 = vpop.f32.mrb[0].mxu0
    %v212 = vadd.f32 %v93, %v211
    %v213 = vpop.f32.mrb[0].mxu0
    %214 = vmatprep.mubr.bf16.mxu0 0
    %215 = vmatmul.mubr.bf16.gmra.mrb[0].mxu0 %v124
    %v216 = vpop.f32.mrb[0].mxu0
    %v217 = vadd.f32 %v93, %v216
    %v218 = vpop.f32.mrb[0].mxu0
    %v219 = vpop.f32.mrb[0].mxu0
    %v220 = vadd.f32 %v93, %v219
    %v221 = vpop.f32.mrb[0].mxu0
    %222 = vdwg.mxu0
    %v223 = vpack.c.bf16 %v164, %v161
    %v224 = vpack.c.bf16 %v172, %v169
    %v225 = vpack.c.bf16 %v180, %v177
    %v226 = vpack.c.bf16 %v188, %v185
    %v227 = vpack.c.bf16 %v196, %v193
    %v228 = vpack.c.bf16 %v204, %v201
    %v229 = vpack.c.bf16 %v212, %v209
    %v230 = vpack.c.bf16 %v220, %v217
    %231 = vst [vmem:[#allocation2] sm:$0xff] %v223
    %232 = vst [vmem:[#allocation2 + $0x8] sm:$0xff] %v224
    %233 = vst [vmem:[#allocation2 + $0x10] sm:$0xff] %v225
    %234 = vst [vmem:[#allocation2 + $0x18] sm:$0xff] %v226
    %235 = vst [vmem:[#allocation2 + $0x20] sm:$0xff] %v227
    %236 = vst [vmem:[#allocation2 + $0x28] sm:$0xff] %v228
    %237 = vst [vmem:[#allocation2 + $0x30] sm:$0xff] %v229
    %238 = vst [vmem:[#allocation2 + $0x38] sm:$0xff] %v230
    %v239 = vld [vmem:[#allocation2] sm:$0xff]
    %v240 = vunpack.c.l.bf16 %v239
    %v241 = vunpack.c.h.bf16 %v239
    %v242 = vld [vmem:[%s2] sm:$0xf]
    %v243 = vld [vmem:[%s2 + $0x4] sm:$0xf]
    %v244 = vld [vmem:[%s2 + $0x8] sm:$0xf]
    %v245 = vld [vmem:[%s2 + $0xc] sm:$0xf]
    %v246 = vld [vmem:[%s2 + $0x10] sm:$0xf]
    %v247 = vld [vmem:[%s2 + $0x14] sm:$0xf]
    %v248 = vld [vmem:[%s2 + $0x18] sm:$0xf]
    %v249 = vld [vmem:[%s2 + $0x1c] sm:$0xf]
    %v250 = vld [vmem:[%s2 + $0x20] sm:$0xf]
    %v251 = vld [vmem:[%s2 + $0x24] sm:$0xf]
    %v252 = vld [vmem:[%s2 + $0x28] sm:$0xf]
    %v253 = vld [vmem:[%s2 + $0x2c] sm:$0xf]
    %v254 = vld [vmem:[%s2 + $0x30] sm:$0xf]
    %v255 = vld [vmem:[%s2 + $0x34] sm:$0xf]
    %v256 = vld [vmem:[%s2 + $0x38] sm:$0xf]
    %v257 = vld [vmem:[%s2 + $0x3c] sm:$0xf]
    %v274 = vunpack.c.l.b16 %v242
    %v275 = vunpack.c.l.b16 %v243
    %v276 = vunpack.c.l.b16 %v244
    %v277 = vunpack.c.l.b16 %v245
    %v278 = vunpack.c.l.b16 %v246
    %v279 = vunpack.c.l.b16 %v247
    %v280 = vunpack.c.l.b16 %v248
    %v281 = vunpack.c.l.b16 %v249
    %v282 = vunpack.c.l.b16 %v250
    %v283 = vunpack.c.l.b16 %v251
    %v284 = vunpack.c.l.b16 %v252
    %v285 = vunpack.c.l.b16 %v253
    %v286 = vunpack.c.l.b16 %v254
    %v287 = vunpack.c.l.b16 %v255
    %v288 = vunpack.c.l.b16 %v256
    %v289 = vunpack.c.l.b16 %v257
    %v290 = vpack.c.b16 %v275, %v274
    %v291 = vpack.c.b16 %v277, %v276
    %v292 = vpack.c.b16 %v279, %v278
    %v293 = vpack.c.b16 %v281, %v280
    %v294 = vpack.c.b16 %v283, %v282
    %v295 = vpack.c.b16 %v285, %v284
    %v296 = vpack.c.b16 %v287, %v286
    %v297 = vpack.c.b16 %v289, %v288
    %306 = vmatprep.subr.bf16.mxu0 0
    %307 = vmatpush1.bf16.msra.mxu0 %v290
    %308 = vmatprep.subr.bf16.mxu0 0
    %309 = vmatpush1.bf16.msra.mxu0 %v291
    %310 = vmatprep.subr.bf16.mxu0 0
    %311 = vmatpush1.bf16.msra.mxu0 %v292
    %312 = vmatprep.subr.bf16.mxu0 0
    %313 = vmatpush1.bf16.msra.mxu0 %v293
    %314 = vmatprep.subr.bf16.mxu0 0
    %315 = vmatpush1.bf16.msra.mxu0 %v294
    %316 = vmatprep.subr.bf16.mxu0 0
    %317 = vmatpush1.bf16.msra.mxu0 %v295
    %318 = vmatprep.subr.bf16.mxu0 0
    %319 = vmatpush1.bf16.msra.mxu0 %v296
    %320 = vmatprep.subr.bf16.mxu0 0
    %321 = vmatpush1.bf16.msra.mxu0 %v297
    %322 = vmatprep.subr.bf16.mxu0 0
    %323 = vmatpush1.bf16.msra.mxu0 0
    %324 = vmatprep.subr.bf16.mxu0 0
    %325 = vmatpush1.bf16.msra.mxu0 0
    %326 = vmatprep.subr.bf16.mxu0 0
    %327 = vmatpush1.bf16.msra.mxu0 0
    %328 = vmatprep.subr.bf16.mxu0 0
    %329 = vmatpush1.bf16.msra.mxu0 0
    %330 = vmatprep.subr.bf16.mxu0 0
    %331 = vmatpush1.bf16.msra.mxu0 0
    %332 = vmatprep.subr.bf16.mxu0 0
    %333 = vmatpush1.bf16.msra.mxu0 0
    %334 = vmatprep.subr.bf16.mxu0 0
    %335 = vmatpush1.bf16.msra.mxu0 0
    %336 = vmatprep.subr.bf16.mxu0 0
    %337 = vmatpush1.bf16.msra.mxu0 0
    %338 = vmatprep.mubr.bf16.mxu0 0
    %339 = vmatmul.mubr.bf16.gmra.mrb[0].mxu0 0
    %v340 = vpop.f32.mrb[0].mxu0
    %v341 = vadd.f32 0.0, %v340
    %v342 = vpop.f32.mrb[0].mxu0
    %v343 = vpop.f32.mrb[0].mxu0
    %v344 = vadd.f32 0.0, %v343
    %v345 = vpop.f32.mrb[0].mxu0
    %346 = vdwg.mxu0
    %v347 = vadd.f32 %v240, %v341
    %v348 = vadd.f32 %v241, %v344
    %v349 = vtanh.pop %v347
    %v350 = vtanh.pop %v348
    %v351 = vpack.c.bf16 %v350, %v349
    %352 = vst [vmem:[#allocation2] sm:$0xff] %v351
    %s353 = scalar_lea.vmem [#allocation2], 8
    %v354 = vld [vmem:[%s353] sm:$0xff]
    %v355 = vunpack.c.l.bf16 %v354
    %v356 = vunpack.c.h.bf16 %v354
    %v357 = vld [vmem:[%s2] sm:$0xf]
    %v358 = vld [vmem:[%s2 + $0x4] sm:$0xf]
    %v359 = vld [vmem:[%s2 + $0x8] sm:$0xf]
    %v360 = vld [vmem:[%s2 + $0xc] sm:$0xf]
    %v361 = vld [vmem:[%s2 + $0x10] sm:$0xf]
    %v362 = vld [vmem:[%s2 + $0x14] sm:$0xf]
    %v363 = vld [vmem:[%s2 + $0x18] sm:$0xf]
    %v364 = vld [vmem:[%s2 + $0x1c] sm:$0xf]
    %v365 = vld [vmem:[%s2 + $0x20] sm:$0xf]
    %v366 = vld [vmem:[%s2 + $0x24] sm:$0xf]
    %v367 = vld [vmem:[%s2 + $0x28] sm:$0xf]
    %v368 = vld [vmem:[%s2 + $0x2c] sm:$0xf]
    %v369 = vld [vmem:[%s2 + $0x30] sm:$0xf]
    %v370 = vld [vmem:[%s2 + $0x34] sm:$0xf]
    %v371 = vld [vmem:[%s2 + $0x38] sm:$0xf]
    %v372 = vld [vmem:[%s2 + $0x3c] sm:$0xf]
    %v389 = vunpack.c.l.b16 %v357
    %v390 = vunpack.c.l.b16 %v358
    %v391 = vunpack.c.l.b16 %v359
    %v392 = vunpack.c.l.b16 %v360
    %v393 = vunpack.c.l.b16 %v361
    %v394 = vunpack.c.l.b16 %v362
    %v395 = vunpack.c.l.b16 %v363
    %v396 = vunpack.c.l.b16 %v364
    %v397 = vunpack.c.l.b16 %v365
    %v398 = vunpack.c.l.b16 %v366
    %v399 = vunpack.c.l.b16 %v367
    %v400 = vunpack.c.l.b16 %v368
    %v401 = vunpack.c.l.b16 %v369
    %v402 = vunpack.c.l.b16 %v370
    %v403 = vunpack.c.l.b16 %v371
    %v404 = vunpack.c.l.b16 %v372
    %v405 = vpack.c.b16 %v390, %v389
    %v406 = vpack.c.b16 %v392, %v391
    %v407 = vpack.c.b16 %v394, %v393
    %v408 = vpack.c.b16 %v396, %v395
    %v409 = vpack.c.b16 %v398, %v397
    %v410 = vpack.c.b16 %v400, %v399
    %v411 = vpack.c.b16 %v402, %v401
    %v412 = vpack.c.b16 %v404, %v403
    %421 = vmatprep.subr.bf16.mxu0 0
    %422 = vmatpush1.bf16.msra.mxu0 %v405
    %423 = vmatprep.subr.bf16.mxu0 0
    %424 = vmatpush1.bf16.msra.mxu0 %v406
    %425 = vmatprep.subr.bf16.mxu0 0
    %426 = vmatpush1.bf16.msra.mxu0 %v407
    %427 = vmatprep.subr.bf16.mxu0 0
    %428 = vmatpush1.bf16.msra.mxu0 %v408
    %429 = vmatprep.subr.bf16.mxu0 0
    %430 = vmatpush1.bf16.msra.mxu0 %v409
    %431 = vmatprep.subr.bf16.mxu0 0
    %432 = vmatpush1.bf16.msra.mxu0 %v410
    %433 = vmatprep.subr.bf16.mxu0 0
    %434 = vmatpush1.bf16.msra.mxu0 %v411
    %435 = vmatprep.subr.bf16.mxu0 0
    %436 = vmatpush1.bf16.msra.mxu0 %v412
    %437 = vmatprep.subr.bf16.mxu0 0
    %438 = vmatpush1.bf16.msra.mxu0 0
    %439 = vmatprep.subr.bf16.mxu0 0
    %440 = vmatpush1.bf16.msra.mxu0 0
    %441 = vmatprep.subr.bf16.mxu0 0
    %442 = vmatpush1.bf16.msra.mxu0 0
    %443 = vmatprep.subr.bf16.mxu0 0
    %444 = vmatpush1.bf16.msra.mxu0 0
    %445 = vmatprep.subr.bf16.mxu0 0
    %446 = vmatpush1.bf16.msra.mxu0 0
    %447 = vmatprep.subr.bf16.mxu0 0
    %448 = vmatpush1.bf16.msra.mxu0 0
    %449 = vmatprep.subr.bf16.mxu0 0
    %450 = vmatpush1.bf16.msra.mxu0 0
    %451 = vmatprep.subr.bf16.mxu0 0
    %452 = vmatpush1.bf16.msra.mxu0 0
    %453 = vmatprep.mubr.bf16.mxu0 0
    %454 = vmatmul.mubr.bf16.gmra.mrb[0].mxu0 %v351
    %v455 = vpop.f32.mrb[0].mxu0
    %v456 = vadd.f32 0.0, %v455
    %v457 = vpop.f32.mrb[0].mxu0
    %v458 = vpop.f32.mrb[0].mxu0
    %v459 = vadd.f32 0.0, %v458
    %v460 = vpop.f32.mrb[0].mxu0
    %461 = vdwg.mxu0
    %v462 = vadd.f32 %v355, %v456
    %v463 = vadd.f32 %v356, %v459
    %v464 = vtanh.pop %v462
    %v465 = vtanh.pop %v463
    %v466 = vpack.c.bf16 %v465, %v464
    %467 = vst [vmem:[%s353] sm:$0xff] %v466
    %s468 = scalar_lea.vmem [#allocation2], 16
    %v469 = vld [vmem:[%s468] sm:$0xff]
    %v470 = vunpack.c.l.bf16 %v469
    %v471 = vunpack.c.h.bf16 %v469
    %v472 = vld [vmem:[%s2] sm:$0xf]
    %v473 = vld [vmem:[%s2 + $0x4] sm:$0xf]
    %v474 = vld [vmem:[%s2 + $0x8] sm:$0xf]
    %v475 = vld [vmem:[%s2 + $0xc] sm:$0xf]
    %v476 = vld [vmem:[%s2 + $0x10] sm:$0xf]
    %v477 = vld [vmem:[%s2 + $0x14] sm:$0xf]
    %v478 = vld [vmem:[%s2 + $0x18] sm:$0xf]
    %v479 = vld [vmem:[%s2 + $0x1c] sm:$0xf]
    %v480 = vld [vmem:[%s2 + $0x20] sm:$0xf]
    %v481 = vld [vmem:[%s2 + $0x24] sm:$0xf]
    %v482 = vld [vmem:[%s2 + $0x28] sm:$0xf]
    %v483 = vld [vmem:[%s2 + $0x2c] sm:$0xf]
    %v484 = vld [vmem:[%s2 + $0x30] sm:$0xf]
    %v485 = vld [vmem:[%s2 + $0x34] sm:$0xf]
    %v486 = vld [vmem:[%s2 + $0x38] sm:$0xf]
    %v487 = vld [vmem:[%s2 + $0x3c] sm:$0xf]
    %v504 = vunpack.c.l.b16 %v472
    %v505 = vunpack.c.l.b16 %v473
    %v506 = vunpack.c.l.b16 %v474
    %v507 = vunpack.c.l.b16 %v475
    %v508 = vunpack.c.l.b16 %v476
    %v509 = vunpack.c.l.b16 %v477
    %v510 = vunpack.c.l.b16 %v478
    %v511 = vunpack.c.l.b16 %v479
    %v512 = vunpack.c.l.b16 %v480
    %v513 = vunpack.c.l.b16 %v481
    %v514 = vunpack.c.l.b16 %v482
    %v515 = vunpack.c.l.b16 %v483
    %v516 = vunpack.c.l.b16 %v484
    %v517 = vunpack.c.l.b16 %v485
    %v518 = vunpack.c.l.b16 %v486
    %v519 = vunpack.c.l.b16 %v487
    %v520 = vpack.c.b16 %v505, %v504
    %v521 = vpack.c.b16 %v507, %v506
    %v522 = vpack.c.b16 %v509, %v508
    %v523 = vpack.c.b16 %v511, %v510
    %v524 = vpack.c.b16 %v513, %v512
    %v525 = vpack.c.b16 %v515, %v514
    %v526 = vpack.c.b16 %v517, %v516
    %v527 = vpack.c.b16 %v519, %v518
    %536 = vmatprep.subr.bf16.mxu0 0
    %537 = vmatpush1.bf16.msra.mxu0 %v520
    %538 = vmatprep.subr.bf16.mxu0 0
    %539 = vmatpush1.bf16.msra.mxu0 %v521
    %540 = vmatprep.subr.bf16.mxu0 0
    %541 = vmatpush1.bf16.msra.mxu0 %v522
    %542 = vmatprep.subr.bf16.mxu0 0
    %543 = vmatpush1.bf16.msra.mxu0 %v523
    %544 = vmatprep.subr.bf16.mxu0 0
    %545 = vmatpush1.bf16.msra.mxu0 %v524
    %546 = vmatprep.subr.bf16.mxu0 0
    %547 = vmatpush1.bf16.msra.mxu0 %v525
    %548 = vmatprep.subr.bf16.mxu0 0
    %549 = vmatpush1.bf16.msra.mxu0 %v526
    %550 = vmatprep.subr.bf16.mxu0 0
    %551 = vmatpush1.bf16.msra.mxu0 %v527
    %552 = vmatprep.subr.bf16.mxu0 0
    %553 = vmatpush1.bf16.msra.mxu0 0
    %554 = vmatprep.subr.bf16.mxu0 0
    %555 = vmatpush1.bf16.msra.mxu0 0
    %556 = vmatprep.subr.bf16.mxu0 0
    %557 = vmatpush1.bf16.msra.mxu0 0
    %558 = vmatprep.subr.bf16.mxu0 0
    %559 = vmatpush1.bf16.msra.mxu0 0
    %560 = vmatprep.subr.bf16.mxu0 0
    %561 = vmatpush1.bf16.msra.mxu0 0
    %562 = vmatprep.subr.bf16.mxu0 0
    %563 = vmatpush1.bf16.msra.mxu0 0
    %564 = vmatprep.subr.bf16.mxu0 0
    %565 = vmatpush1.bf16.msra.mxu0 0
    %566 = vmatprep.subr.bf16.mxu0 0
    %567 = vmatpush1.bf16.msra.mxu0 0
    %568 = vmatprep.mubr.bf16.mxu0 0
    %569 = vmatmul.mubr.bf16.gmra.mrb[0].mxu0 %v466
    %v570 = vpop.f32.mrb[0].mxu0
    %v571 = vadd.f32 0.0, %v570
    %v572 = vpop.f32.mrb[0].mxu0
    %v573 = vpop.f32.mrb[0].mxu0
    %v574 = vadd.f32 0.0, %v573
    %v575 = vpop.f32.mrb[0].mxu0
    %576 = vdwg.mxu0
    %v577 = vadd.f32 %v470, %v571
    %v578 = vadd.f32 %v471, %v574
    %v579 = vtanh.pop %v577
    %v580 = vtanh.pop %v578
    %v581 = vpack.c.bf16 %v580, %v579
    %582 = vst [vmem:[%s468] sm:$0xff] %v581
    %s583 = scalar_lea.vmem [#allocation2], 24
    %v584 = vld [vmem:[%s583] sm:$0xff]
    %v585 = vunpack.c.l.bf16 %v584
    %v586 = vunpack.c.h.bf16 %v584
    %v587 = vld [vmem:[%s2] sm:$0xf]
    %v588 = vld [vmem:[%s2 + $0x4] sm:$0xf]
    %v589 = vld [vmem:[%s2 + $0x8] sm:$0xf]
    %v590 = vld [vmem:[%s2 + $0xc] sm:$0xf]
    %v591 = vld [vmem:[%s2 + $0x10] sm:$0xf]
    %v592 = vld [vmem:[%s2 + $0x14] sm:$0xf]
    %v593 = vld [vmem:[%s2 + $0x18] sm:$0xf]
    %v594 = vld [vmem:[%s2 + $0x1c] sm:$0xf]
    %v595 = vld [vmem:[%s2 + $0x20] sm:$0xf]
    %v596 = vld [vmem:[%s2 + $0x24] sm:$0xf]
    %v597 = vld [vmem:[%s2 + $0x28] sm:$0xf]
    %v598 = vld [vmem:[%s2 + $0x2c] sm:$0xf]
    %v599 = vld [vmem:[%s2 + $0x30] sm:$0xf]
    %v600 = vld [vmem:[%s2 + $0x34] sm:$0xf]
    %v601 = vld [vmem:[%s2 + $0x38] sm:$0xf]
    %v602 = vld [vmem:[%s2 + $0x3c] sm:$0xf]
    %v619 = vunpack.c.l.b16 %v587
    %v620 = vunpack.c.l.b16 %v588
    %v621 = vunpack.c.l.b16 %v589
    %v622 = vunpack.c.l.b16 %v590
    %v623 = vunpack.c.l.b16 %v591
    %v624 = vunpack.c.l.b16 %v592
    %v625 = vunpack.c.l.b16 %v593
    %v626 = vunpack.c.l.b16 %v594
    %v627 = vunpack.c.l.b16 %v595
    %v628 = vunpack.c.l.b16 %v596
    %v629 = vunpack.c.l.b16 %v597
    %v630 = vunpack.c.l.b16 %v598
    %v631 = vunpack.c.l.b16 %v599
    %v632 = vunpack.c.l.b16 %v600
    %v633 = vunpack.c.l.b16 %v601
    %v634 = vunpack.c.l.b16 %v602
    %v635 = vpack.c.b16 %v620, %v619
    %v636 = vpack.c.b16 %v622, %v621
    %v637 = vpack.c.b16 %v624, %v623
    %v638 = vpack.c.b16 %v626, %v625
    %v639 = vpack.c.b16 %v628, %v627
    %v640 = vpack.c.b16 %v630, %v629
    %v641 = vpack.c.b16 %v632, %v631
    %v642 = vpack.c.b16 %v634, %v633
    %651 = vmatprep.subr.bf16.mxu0 0
    %652 = vmatpush1.bf16.msra.mxu0 %v635
    %653 = vmatprep.subr.bf16.mxu0 0
    %654 = vmatpush1.bf16.msra.mxu0 %v636
    %655 = vmatprep.subr.bf16.mxu0 0
    %656 = vmatpush1.bf16.msra.mxu0 %v637
    %657 = vmatprep.subr.bf16.mxu0 0
    %658 = vmatpush1.bf16.msra.mxu0 %v638
    %659 = vmatprep.subr.bf16.mxu0 0
    %660 = vmatpush1.bf16.msra.mxu0 %v639
    %661 = vmatprep.subr.bf16.mxu0 0
    %662 = vmatpush1.bf16.msra.mxu0 %v640
    %663 = vmatprep.subr.bf16.mxu0 0
    %664 = vmatpush1.bf16.msra.mxu0 %v641
    %665 = vmatprep.subr.bf16.mxu0 0
    %666 = vmatpush1.bf16.msra.mxu0 %v642
    %667 = vmatprep.subr.bf16.mxu0 0
    %668 = vmatpush1.bf16.msra.mxu0 0
    %669 = vmatprep.subr.bf16.mxu0 0
    %670 = vmatpush1.bf16.msra.mxu0 0
    %671 = vmatprep.subr.bf16.mxu0 0
    %672 = vmatpush1.bf16.msra.mxu0 0
    %673 = vmatprep.subr.bf16.mxu0 0
    %674 = vmatpush1.bf16.msra.mxu0 0
    %675 = vmatprep.subr.bf16.mxu0 0
    %676 = vmatpush1.bf16.msra.mxu0 0
    %677 = vmatprep.subr.bf16.mxu0 0
    %678 = vmatpush1.bf16.msra.mxu0 0
    %679 = vmatprep.subr.bf16.mxu0 0
    %680 = vmatpush1.bf16.msra.mxu0 0
    %681 = vmatprep.subr.bf16.mxu0 0
    %682 = vmatpush1.bf16.msra.mxu0 0
    %683 = vmatprep.mubr.bf16.mxu0 0
    %684 = vmatmul.mubr.bf16.gmra.mrb[0].mxu0 %v581
    %v685 = vpop.f32.mrb[0].mxu0
    %v686 = vadd.f32 0.0, %v685
    %v687 = vpop.f32.mrb[0].mxu0
    %v688 = vpop.f32.mrb[0].mxu0
    %v689 = vadd.f32 0.0, %v688
    %v690 = vpop.f32.mrb[0].mxu0
    %691 = vdwg.mxu0
    %v692 = vadd.f32 %v585, %v686
    %v693 = vadd.f32 %v586, %v689
    %v694 = vtanh.pop %v692
    %v695 = vtanh.pop %v693
    %v696 = vpack.c.bf16 %v695, %v694
    %697 = vst [vmem:[%s583] sm:$0xff] %v696
    %s698 = scalar_lea.vmem [#allocation2], 32
    %v699 = vld [vmem:[%s698] sm:$0xff]
    %v700 = vunpack.c.l.bf16 %v699
    %v701 = vunpack.c.h.bf16 %v699
    %v702 = vld [vmem:[%s2] sm:$0xf]
    %v703 = vld [vmem:[%s2 + $0x4] sm:$0xf]
    %v704 = vld [vmem:[%s2 + $0x8] sm:$0xf]
    %v705 = vld [vmem:[%s2 + $0xc] sm:$0xf]
    %v706 = vld [vmem:[%s2 + $0x10] sm:$0xf]
    %v707 = vld [vmem:[%s2 + $0x14] sm:$0xf]
    %v708 = vld [vmem:[%s2 + $0x18] sm:$0xf]
    %v709 = vld [vmem:[%s2 + $0x1c] sm:$0xf]
    %v710 = vld [vmem:[%s2 + $0x20] sm:$0xf]
    %v711 = vld [vmem:[%s2 + $0x24] sm:$0xf]
    %v712 = vld [vmem:[%s2 + $0x28] sm:$0xf]
    %v713 = vld [vmem:[%s2 + $0x2c] sm:$0xf]
    %v714 = vld [vmem:[%s2 + $0x30] sm:$0xf]
    %v715 = vld [vmem:[%s2 + $0x34] sm:$0xf]
    %v716 = vld [vmem:[%s2 + $0x38] sm:$0xf]
    %v717 = vld [vmem:[%s2 + $0x3c] sm:$0xf]
    %v734 = vunpack.c.l.b16 %v702
    %v735 = vunpack.c.l.b16 %v703
    %v736 = vunpack.c.l.b16 %v704
    %v737 = vunpack.c.l.b16 %v705
    %v738 = vunpack.c.l.b16 %v706
    %v739 = vunpack.c.l.b16 %v707
    %v740 = vunpack.c.l.b16 %v708
    %v741 = vunpack.c.l.b16 %v709
    %v742 = vunpack.c.l.b16 %v710
    %v743 = vunpack.c.l.b16 %v711
    %v744 = vunpack.c.l.b16 %v712
    %v745 = vunpack.c.l.b16 %v713
    %v746 = vunpack.c.l.b16 %v714
    %v747 = vunpack.c.l.b16 %v715
    %v748 = vunpack.c.l.b16 %v716
    %v749 = vunpack.c.l.b16 %v717
    %v750 = vpack.c.b16 %v735, %v734
    %v751 = vpack.c.b16 %v737, %v736
    %v752 = vpack.c.b16 %v739, %v738
    %v753 = vpack.c.b16 %v741, %v740
    %v754 = vpack.c.b16 %v743, %v742
    %v755 = vpack.c.b16 %v745, %v744
    %v756 = vpack.c.b16 %v747, %v746
    %v757 = vpack.c.b16 %v749, %v748
    %766 = vmatprep.subr.bf16.mxu0 0
    %767 = vmatpush1.bf16.msra.mxu0 %v750
    %768 = vmatprep.subr.bf16.mxu0 0
    %769 = vmatpush1.bf16.msra.mxu0 %v751
    %770 = vmatprep.subr.bf16.mxu0 0
    %771 = vmatpush1.bf16.msra.mxu0 %v752
    %772 = vmatprep.subr.bf16.mxu0 0
    %773 = vmatpush1.bf16.msra.mxu0 %v753
    %774 = vmatprep.subr.bf16.mxu0 0
    %775 = vmatpush1.bf16.msra.mxu0 %v754
    %776 = vmatprep.subr.bf16.mxu0 0
    %777 = vmatpush1.bf16.msra.mxu0 %v755
    %778 = vmatprep.subr.bf16.mxu0 0
    %779 = vmatpush1.bf16.msra.mxu0 %v756
    %780 = vmatprep.subr.bf16.mxu0 0
    %781 = vmatpush1.bf16.msra.mxu0 %v757
    %782 = vmatprep.subr.bf16.mxu0 0
    %783 = vmatpush1.bf16.msra.mxu0 0
    %784 = vmatprep.subr.bf16.mxu0 0
    %785 = vmatpush1.bf16.msra.mxu0 0
    %786 = vmatprep.subr.bf16.mxu0 0
    %787 = vmatpush1.bf16.msra.mxu0 0
    %788 = vmatprep.subr.bf16.mxu0 0
    %789 = vmatpush1.bf16.msra.mxu0 0
    %790 = vmatprep.subr.bf16.mxu0 0
    %791 = vmatpush1.bf16.msra.mxu0 0
    %792 = vmatprep.subr.bf16.mxu0 0
    %793 = vmatpush1.bf16.msra.mxu0 0
    %794 = vmatprep.subr.bf16.mxu0 0
    %795 = vmatpush1.bf16.msra.mxu0 0
    %796 = vmatprep.subr.bf16.mxu0 0
    %797 = vmatpush1.bf16.msra.mxu0 0
    %798 = vmatprep.mubr.bf16.mxu0 0
    %799 = vmatmul.mubr.bf16.gmra.mrb[0].mxu0 %v696
    %v800 = vpop.f32.mrb[0].mxu0
    %v801 = vadd.f32 0.0, %v800
    %v802 = vpop.f32.mrb[0].mxu0
    %v803 = vpop.f32.mrb[0].mxu0
    %v804 = vadd.f32 0.0, %v803
    %v805 = vpop.f32.mrb[0].mxu0
    %806 = vdwg.mxu0
    %v807 = vadd.f32 %v700, %v801
    %v808 = vadd.f32 %v701, %v804
    %v809 = vtanh.pop %v807
    %v810 = vtanh.pop %v808
    %v811 = vpack.c.bf16 %v810, %v809
    %812 = vst [vmem:[%s698] sm:$0xff] %v811
    %s813 = scalar_lea.vmem [#allocation2], 40
    %v814 = vld [vmem:[%s813] sm:$0xff]
    %v815 = vunpack.c.l.bf16 %v814
    %v816 = vunpack.c.h.bf16 %v814
    %v817 = vld [vmem:[%s2] sm:$0xf]
    %v818 = vld [vmem:[%s2 + $0x4] sm:$0xf]
    %v819 = vld [vmem:[%s2 + $0x8] sm:$0xf]
    %v820 = vld [vmem:[%s2 + $0xc] sm:$0xf]
    %v821 = vld [vmem:[%s2 + $0x10] sm:$0xf]
    %v822 = vld [vmem:[%s2 + $0x14] sm:$0xf]
    %v823 = vld [vmem:[%s2 + $0x18] sm:$0xf]
    %v824 = vld [vmem:[%s2 + $0x1c] sm:$0xf]
    %v825 = vld [vmem:[%s2 + $0x20] sm:$0xf]
    %v826 = vld [vmem:[%s2 + $0x24] sm:$0xf]
    %v827 = vld [vmem:[%s2 + $0x28] sm:$0xf]
    %v828 = vld [vmem:[%s2 + $0x2c] sm:$0xf]
    %v829 = vld [vmem:[%s2 + $0x30] sm:$0xf]
    %v830 = vld [vmem:[%s2 + $0x34] sm:$0xf]
    %v831 = vld [vmem:[%s2 + $0x38] sm:$0xf]
    %v832 = vld [vmem:[%s2 + $0x3c] sm:$0xf]
    %v849 = vunpack.c.l.b16 %v817
    %v850 = vunpack.c.l.b16 %v818
    %v851 = vunpack.c.l.b16 %v819
    %v852 = vunpack.c.l.b16 %v820
    %v853 = vunpack.c.l.b16 %v821
    %v854 = vunpack.c.l.b16 %v822
    %v855 = vunpack.c.l.b16 %v823
    %v856 = vunpack.c.l.b16 %v824
    %v857 = vunpack.c.l.b16 %v825
    %v858 = vunpack.c.l.b16 %v826
    %v859 = vunpack.c.l.b16 %v827
    %v860 = vunpack.c.l.b16 %v828
    %v861 = vunpack.c.l.b16 %v829
    %v862 = vunpack.c.l.b16 %v830
    %v863 = vunpack.c.l.b16 %v831
    %v864 = vunpack.c.l.b16 %v832
    %v865 = vpack.c.b16 %v850, %v849
    %v866 = vpack.c.b16 %v852, %v851
    %v867 = vpack.c.b16 %v854, %v853
    %v868 = vpack.c.b16 %v856, %v855
    %v869 = vpack.c.b16 %v858, %v857
    %v870 = vpack.c.b16 %v860, %v859
    %v871 = vpack.c.b16 %v862, %v861
    %v872 = vpack.c.b16 %v864, %v863
    %881 = vmatprep.subr.bf16.mxu0 0
    %882 = vmatpush1.bf16.msra.mxu0 %v865
    %883 = vmatprep.subr.bf16.mxu0 0
    %884 = vmatpush1.bf16.msra.mxu0 %v866
    %885 = vmatprep.subr.bf16.mxu0 0
    %886 = vmatpush1.bf16.msra.mxu0 %v867
    %887 = vmatprep.subr.bf16.mxu0 0
    %888 = vmatpush1.bf16.msra.mxu0 %v868
    %889 = vmatprep.subr.bf16.mxu0 0
    %890 = vmatpush1.bf16.msra.mxu0 %v869
    %891 = vmatprep.subr.bf16.mxu0 0
    %892 = vmatpush1.bf16.msra.mxu0 %v870
    %893 = vmatprep.subr.bf16.mxu0 0
    %894 = vmatpush1.bf16.msra.mxu0 %v871
    %895 = vmatprep.subr.bf16.mxu0 0
    %896 = vmatpush1.bf16.msra.mxu0 %v872
    %897 = vmatprep.subr.bf16.mxu0 0
    %898 = vmatpush1.bf16.msra.mxu0 0
    %899 = vmatprep.subr.bf16.mxu0 0
    %900 = vmatpush1.bf16.msra.mxu0 0
    %901 = vmatprep.subr.bf16.mxu0 0
    %902 = vmatpush1.bf16.msra.mxu0 0
    %903 = vmatprep.subr.bf16.mxu0 0
    %904 = vmatpush1.bf16.msra.mxu0 0
    %905 = vmatprep.subr.bf16.mxu0 0
    %906 = vmatpush1.bf16.msra.mxu0 0
    %907 = vmatprep.subr.bf16.mxu0 0
    %908 = vmatpush1.bf16.msra.mxu0 0
    %909 = vmatprep.subr.bf16.mxu0 0
    %910 = vmatpush1.bf16.msra.mxu0 0
    %911 = vmatprep.subr.bf16.mxu0 0
    %912 = vmatpush1.bf16.msra.mxu0 0
    %913 = vmatprep.mubr.bf16.mxu0 0
    %914 = vmatmul.mubr.bf16.gmra.mrb[0].mxu0 %v811
    %v915 = vpop.f32.mrb[0].mxu0
    %v916 = vadd.f32 0.0, %v915
    %v917 = vpop.f32.mrb[0].mxu0
    %v918 = vpop.f32.mrb[0].mxu0
    %v919 = vadd.f32 0.0, %v918
    %v920 = vpop.f32.mrb[0].mxu0
    %921 = vdwg.mxu0
    %v922 = vadd.f32 %v815, %v916
    %v923 = vadd.f32 %v816, %v919
    %v924 = vtanh.pop %v922
    %v925 = vtanh.pop %v923
    %v926 = vpack.c.bf16 %v925, %v924
    %927 = vst [vmem:[%s813] sm:$0xff] %v926
    %s928 = scalar_lea.vmem [#allocation2], 48
    %v929 = vld [vmem:[%s928] sm:$0xff]
    %v930 = vunpack.c.l.bf16 %v929
    %v931 = vunpack.c.h.bf16 %v929
    %v932 = vld [vmem:[%s2] sm:$0xf]
    %v933 = vld [vmem:[%s2 + $0x4] sm:$0xf]
    %v934 = vld [vmem:[%s2 + $0x8] sm:$0xf]
    %v935 = vld [vmem:[%s2 + $0xc] sm:$0xf]
    %v936 = vld [vmem:[%s2 + $0x10] sm:$0xf]
    %v937 = vld [vmem:[%s2 + $0x14] sm:$0xf]
    %v938 = vld [vmem:[%s2 + $0x18] sm:$0xf]
    %v939 = vld [vmem:[%s2 + $0x1c] sm:$0xf]
    %v940 = vld [vmem:[%s2 + $0x20] sm:$0xf]
    %v941 = vld [vmem:[%s2 + $0x24] sm:$0xf]
    %v942 = vld [vmem:[%s2 + $0x28] sm:$0xf]
    %v943 = vld [vmem:[%s2 + $0x2c] sm:$0xf]
    %v944 = vld [vmem:[%s2 + $0x30] sm:$0xf]
    %v945 = vld [vmem:[%s2 + $0x34] sm:$0xf]
    %v946 = vld [vmem:[%s2 + $0x38] sm:$0xf]
    %v947 = vld [vmem:[%s2 + $0x3c] sm:$0xf]
    %v964 = vunpack.c.l.b16 %v932
    %v965 = vunpack.c.l.b16 %v933
    %v966 = vunpack.c.l.b16 %v934
    %v967 = vunpack.c.l.b16 %v935
    %v968 = vunpack.c.l.b16 %v936
    %v969 = vunpack.c.l.b16 %v937
    %v970 = vunpack.c.l.b16 %v938
    %v971 = vunpack.c.l.b16 %v939
    %v972 = vunpack.c.l.b16 %v940
    %v973 = vunpack.c.l.b16 %v941
    %v974 = vunpack.c.l.b16 %v942
    %v975 = vunpack.c.l.b16 %v943
    %v976 = vunpack.c.l.b16 %v944
    %v977 = vunpack.c.l.b16 %v945
    %v978 = vunpack.c.l.b16 %v946
    %v979 = vunpack.c.l.b16 %v947
    %v980 = vpack.c.b16 %v965, %v964
    %v981 = vpack.c.b16 %v967, %v966
    %v982 = vpack.c.b16 %v969, %v968
    %v983 = vpack.c.b16 %v971, %v970
    %v984 = vpack.c.b16 %v973, %v972
    %v985 = vpack.c.b16 %v975, %v974
    %v986 = vpack.c.b16 %v977, %v976
    %v987 = vpack.c.b16 %v979, %v978
    %996 = vmatprep.subr.bf16.mxu0 0
    %997 = vmatpush1.bf16.msra.mxu0 %v980
    %998 = vmatprep.subr.bf16.mxu0 0
    %999 = vmatpush1.bf16.msra.mxu0 %v981
    %1000 = vmatprep.subr.bf16.mxu0 0
    %1001 = vmatpush1.bf16.msra.mxu0 %v982
    %1002 = vmatprep.subr.bf16.mxu0 0
    %1003 = vmatpush1.bf16.msra.mxu0 %v983
    %1004 = vmatprep.subr.bf16.mxu0 0
    %1005 = vmatpush1.bf16.msra.mxu0 %v984
    %1006 = vmatprep.subr.bf16.mxu0 0
    %1007 = vmatpush1.bf16.msra.mxu0 %v985
    %1008 = vmatprep.subr.bf16.mxu0 0
    %1009 = vmatpush1.bf16.msra.mxu0 %v986
    %1010 = vmatprep.subr.bf16.mxu0 0
    %1011 = vmatpush1.bf16.msra.mxu0 %v987
    %1012 = vmatprep.subr.bf16.mxu0 0
    %1013 = vmatpush1.bf16.msra.mxu0 0
    %1014 = vmatprep.subr.bf16.mxu0 0
    %1015 = vmatpush1.bf16.msra.mxu0 0
    %1016 = vmatprep.subr.bf16.mxu0 0
    %1017 = vmatpush1.bf16.msra.mxu0 0
    %1018 = vmatprep.subr.bf16.mxu0 0
    %1019 = vmatpush1.bf16.msra.mxu0 0
    %1020 = vmatprep.subr.bf16.mxu0 0
    %1021 = vmatpush1.bf16.msra.mxu0 0
    %1022 = vmatprep.subr.bf16.mxu0 0
    %1023 = vmatpush1.bf16.msra.mxu0 0
    %1024 = vmatprep.subr.bf16.mxu0 0
    %1025 = vmatpush1.bf16.msra.mxu0 0
    %1026 = vmatprep.subr.bf16.mxu0 0
    %1027 = vmatpush1.bf16.msra.mxu0 0
    %1028 = vmatprep.mubr.bf16.mxu0 0
    %1029 = vmatmul.mubr.bf16.gmra.mrb[0].mxu0 %v926
    %v1030 = vpop.f32.mrb[0].mxu0
    %v1031 = vadd.f32 0.0, %v1030
    %v1032 = vpop.f32.mrb[0].mxu0
    %v1033 = vpop.f32.mrb[0].mxu0
    %v1034 = vadd.f32 0.0, %v1033
    %v1035 = vpop.f32.mrb[0].mxu0
    %1036 = vdwg.mxu0
    %v1037 = vadd.f32 %v930, %v1031
    %v1038 = vadd.f32 %v931, %v1034
    %v1039 = vtanh.pop %v1037
    %v1040 = vtanh.pop %v1038
    %v1041 = vpack.c.bf16 %v1040, %v1039
    %1042 = vst [vmem:[%s928] sm:$0xff] %v1041
    %s1043 = scalar_lea.vmem [#allocation2], 56
    %v1044 = vld [vmem:[%s1043] sm:$0xff]
    %v1045 = vunpack.c.l.bf16 %v1044
    %v1046 = vunpack.c.h.bf16 %v1044
    %v1047 = vld [vmem:[%s2] sm:$0xf]
    %v1048 = vld [vmem:[%s2 + $0x4] sm:$0xf]
    %v1049 = vld [vmem:[%s2 + $0x8] sm:$0xf]
    %v1050 = vld [vmem:[%s2 + $0xc] sm:$0xf]
    %v1051 = vld [vmem:[%s2 + $0x10] sm:$0xf]
    %v1052 = vld [vmem:[%s2 + $0x14] sm:$0xf]
    %v1053 = vld [vmem:[%s2 + $0x18] sm:$0xf]
    %v1054 = vld [vmem:[%s2 + $0x1c] sm:$0xf]
    %v1055 = vld [vmem:[%s2 + $0x20] sm:$0xf]
    %v1056 = vld [vmem:[%s2 + $0x24] sm:$0xf]
    %v1057 = vld [vmem:[%s2 + $0x28] sm:$0xf]
    %v1058 = vld [vmem:[%s2 + $0x2c] sm:$0xf]
    %v1059 = vld [vmem:[%s2 + $0x30] sm:$0xf]
    %v1060 = vld [vmem:[%s2 + $0x34] sm:$0xf]
    %v1061 = vld [vmem:[%s2 + $0x38] sm:$0xf]
    %v1062 = vld [vmem:[%s2 + $0x3c] sm:$0xf]
    %v1079 = vunpack.c.l.b16 %v1047
    %v1080 = vunpack.c.l.b16 %v1048
    %v1081 = vunpack.c.l.b16 %v1049
    %v1082 = vunpack.c.l.b16 %v1050
    %v1083 = vunpack.c.l.b16 %v1051
    %v1084 = vunpack.c.l.b16 %v1052
    %v1085 = vunpack.c.l.b16 %v1053
    %v1086 = vunpack.c.l.b16 %v1054
    %v1087 = vunpack.c.l.b16 %v1055
    %v1088 = vunpack.c.l.b16 %v1056
    %v1089 = vunpack.c.l.b16 %v1057
    %v1090 = vunpack.c.l.b16 %v1058
    %v1091 = vunpack.c.l.b16 %v1059
    %v1092 = vunpack.c.l.b16 %v1060
    %v1093 = vunpack.c.l.b16 %v1061
    %v1094 = vunpack.c.l.b16 %v1062
    %v1095 = vpack.c.b16 %v1080, %v1079
    %v1096 = vpack.c.b16 %v1082, %v1081
    %v1097 = vpack.c.b16 %v1084, %v1083
    %v1098 = vpack.c.b16 %v1086, %v1085
    %v1099 = vpack.c.b16 %v1088, %v1087
    %v1100 = vpack.c.b16 %v1090, %v1089
    %v1101 = vpack.c.b16 %v1092, %v1091
    %v1102 = vpack.c.b16 %v1094, %v1093
    %1111 = vmatprep.subr.bf16.mxu0 0
    %1112 = vmatpush1.bf16.msra.mxu0 %v1095
    %1113 = vmatprep.subr.bf16.mxu0 0
    %1114 = vmatpush1.bf16.msra.mxu0 %v1096
    %1115 = vmatprep.subr.bf16.mxu0 0
    %1116 = vmatpush1.bf16.msra.mxu0 %v1097
    %1117 = vmatprep.subr.bf16.mxu0 0
    %1118 = vmatpush1.bf16.msra.mxu0 %v1098
    %1119 = vmatprep.subr.bf16.mxu0 0
    %1120 = vmatpush1.bf16.msra.mxu0 %v1099
    %1121 = vmatprep.subr.bf16.mxu0 0
    %1122 = vmatpush1.bf16.msra.mxu0 %v1100
    %1123 = vmatprep.subr.bf16.mxu0 0
    %1124 = vmatpush1.bf16.msra.mxu0 %v1101
    %1125 = vmatprep.subr.bf16.mxu0 0
    %1126 = vmatpush1.bf16.msra.mxu0 %v1102
    %1127 = vmatprep.subr.bf16.mxu0 0
    %1128 = vmatpush1.bf16.msra.mxu0 0
    %1129 = vmatprep.subr.bf16.mxu0 0
    %1130 = vmatpush1.bf16.msra.mxu0 0
    %1131 = vmatprep.subr.bf16.mxu0 0
    %1132 = vmatpush1.bf16.msra.mxu0 0
    %1133 = vmatprep.subr.bf16.mxu0 0
    %1134 = vmatpush1.bf16.msra.mxu0 0
    %1135 = vmatprep.subr.bf16.mxu0 0
    %1136 = vmatpush1.bf16.msra.mxu0 0
    %1137 = vmatprep.subr.bf16.mxu0 0
    %1138 = vmatpush1.bf16.msra.mxu0 0
    %1139 = vmatprep.subr.bf16.mxu0 0
    %1140 = vmatpush1.bf16.msra.mxu0 0
    %1141 = vmatprep.subr.bf16.mxu0 0
    %1142 = vmatpush1.bf16.msra.mxu0 0
    %1143 = vmatprep.mubr.bf16.mxu0 0
    %1144 = vmatmul.mubr.bf16.gmra.mrb[0].mxu0 %v1041
    %v1145 = vpop.f32.mrb[0].mxu0
    %v1146 = vadd.f32 0.0, %v1145
    %v1147 = vpop.f32.mrb[0].mxu0
    %v1148 = vpop.f32.mrb[0].mxu0
    %v1149 = vadd.f32 0.0, %v1148
    %v1150 = vpop.f32.mrb[0].mxu0
    %1151 = vdwg.mxu0
    %v1152 = vadd.f32 %v1045, %v1146
    %v1153 = vadd.f32 %v1046, %v1149
    %v1154 = vtanh.pop %v1152
    %v1155 = vtanh.pop %v1153
    %v1156 = vpack.c.bf16 %v1155, %v1154
    %1157 = vst [vmem:[%s1043] sm:$0xff] %v1156
    %v1158 = vld [vmem:[#allocation2] sm:$0xff]
    %v1159 = vld [vmem:[#allocation2 + $0x8] sm:$0xff]
    %v1160 = vld [vmem:[#allocation2 + $0x10] sm:$0xff]
    %v1161 = vld [vmem:[#allocation2 + $0x18] sm:$0xff]
    %v1162 = vld [vmem:[#allocation2 + $0x20] sm:$0xff]
    %v1163 = vld [vmem:[#allocation2 + $0x28] sm:$0xff]
    %v1164 = vld [vmem:[#allocation2 + $0x30] sm:$0xff]
    %v1165 = vld [vmem:[#allocation2 + $0x38] sm:$0xff]
    %v1166 = vld [vmem:[%s4] sm:$0xf]
    %v1167 = vld [vmem:[%s4 + $0x4] sm:$0xf]
    %v1168 = vld [vmem:[%s4 + $0x8] sm:$0xf]
    %v1169 = vld [vmem:[%s4 + $0xc] sm:$0xf]
    %v1170 = vld [vmem:[%s4 + $0x10] sm:$0xf]
    %v1171 = vld [vmem:[%s4 + $0x14] sm:$0xf]
    %v1172 = vld [vmem:[%s4 + $0x18] sm:$0xf]
    %v1173 = vld [vmem:[%s4 + $0x1c] sm:$0xf]
    %v1174 = vld [vmem:[%s4 + $0x20] sm:$0xf]
    %v1175 = vld [vmem:[%s4 + $0x24] sm:$0xf]
    %v1176 = vld [vmem:[%s4 + $0x28] sm:$0xf]
    %v1177 = vld [vmem:[%s4 + $0x2c] sm:$0xf]
    %v1178 = vld [vmem:[%s4 + $0x30] sm:$0xf]
    %v1179 = vld [vmem:[%s4 + $0x34] sm:$0xf]
    %v1180 = vld [vmem:[%s4 + $0x38] sm:$0xf]
    %v1181 = vld [vmem:[%s4 + $0x3c] sm:$0xf]
    %v1182 = vld [vmem:[%s6] sm:$0x1]
    %v1184 = vlaneseq
    %v1185 = vshrl.u32 %v1184, 7
    %v1186 = vsub.s32 0, %v1185
    %v1187 = vrot.slane %v1182, %v1186
    %v1205 = vunpack.c.l.b16 %v1166
    %v1206 = vunpack.c.l.b16 %v1167
    %v1207 = vunpack.c.l.b16 %v1168
    %v1208 = vunpack.c.l.b16 %v1169
    %v1209 = vunpack.c.l.b16 %v1170
    %v1210 = vunpack.c.l.b16 %v1171
    %v1211 = vunpack.c.l.b16 %v1172
    %v1212 = vunpack.c.l.b16 %v1173
    %v1213 = vunpack.c.l.b16 %v1174
    %v1214 = vunpack.c.l.b16 %v1175
    %v1215 = vunpack.c.l.b16 %v1176
    %v1216 = vunpack.c.l.b16 %v1177
    %v1217 = vunpack.c.l.b16 %v1178
    %v1218 = vunpack.c.l.b16 %v1179
    %v1219 = vunpack.c.l.b16 %v1180
    %v1220 = vunpack.c.l.b16 %v1181
    %v1221 = vpack.c.b16 %v1206, %v1205
    %v1222 = vpack.c.b16 %v1208, %v1207
    %v1223 = vpack.c.b16 %v1210, %v1209
    %v1224 = vpack.c.b16 %v1212, %v1211
    %v1225 = vpack.c.b16 %v1214, %v1213
    %v1226 = vpack.c.b16 %v1216, %v1215
    %v1227 = vpack.c.b16 %v1218, %v1217
    %v1228 = vpack.c.b16 %v1220, %v1219
    %1237 = vmatprep.subr.bf16.mxu0 0
    %1238 = vmatpush1.bf16.msra.mxu0 %v1221
    %1239 = vmatprep.subr.bf16.mxu0 0
    %1240 = vmatpush1.bf16.msra.mxu0 %v1222
    %1241 = vmatprep.subr.bf16.mxu0 0
    %1242 = vmatpush1.bf16.msra.mxu0 %v1223
    %1243 = vmatprep.subr.bf16.mxu0 0
    %1244 = vmatpush1.bf16.msra.mxu0 %v1224
    %1245 = vmatprep.subr.bf16.mxu0 0
    %1246 = vmatpush1.bf16.msra.mxu0 %v1225
    %1247 = vmatprep.subr.bf16.mxu0 0
    %1248 = vmatpush1.bf16.msra.mxu0 %v1226
    %1249 = vmatprep.subr.bf16.mxu0 0
    %1250 = vmatpush1.bf16.msra.mxu0 %v1227
    %1251 = vmatprep.subr.bf16.mxu0 0
    %1252 = vmatpush1.bf16.msra.mxu0 %v1228
    %1253 = vmatprep.subr.bf16.mxu0 0
    %1254 = vmatpush1.bf16.msra.mxu0 0
    %1255 = vmatprep.subr.bf16.mxu0 0
    %1256 = vmatpush1.bf16.msra.mxu0 0
    %1257 = vmatprep.subr.bf16.mxu0 0
    %1258 = vmatpush1.bf16.msra.mxu0 0
    %1259 = vmatprep.subr.bf16.mxu0 0
    %1260 = vmatpush1.bf16.msra.mxu0 0
    %1261 = vmatprep.subr.bf16.mxu0 0
    %1262 = vmatpush1.bf16.msra.mxu0 0
    %1263 = vmatprep.subr.bf16.mxu0 0
    %1264 = vmatpush1.bf16.msra.mxu0 0
    %1265 = vmatprep.subr.bf16.mxu0 0
    %1266 = vmatpush1.bf16.msra.mxu0 0
    %1267 = vmatprep.subr.bf16.mxu0 0
    %1268 = vmatpush1.bf16.msra.mxu0 0
    %1269 = vmatprep.mubr.bf16.mxu0 0
    %1270 = vmatmul.mubr.bf16.gmra.mrb[0].mxu0 %v1158
    %v1271 = vpop.f32.mrb[0].mxu0
    %v1272 = vadd.f32 %v1187, %v1271
    %v1273 = vpop.f32.mrb[0].mxu0
    %v1274 = vpop.f32.mrb[0].mxu0
    %v1275 = vadd.f32 %v1187, %v1274
    %v1276 = vpop.f32.mrb[0].mxu0
    %1277 = vmatprep.mubr.bf16.mxu0 0
    %1278 = vmatmul.mubr.bf16.gmra.mrb[0].mxu0 %v1159
    %v1279 = vpop.f32.mrb[0].mxu0
    %v1280 = vadd.f32 %v1187, %v1279
    %v1281 = vpop.f32.mrb[0].mxu0
    %v1282 = vpop.f32.mrb[0].mxu0
    %v1283 = vadd.f32 %v1187, %v1282
    %v1284 = vpop.f32.mrb[0].mxu0
    %1285 = vmatprep.mubr.bf16.mxu0 0
    %1286 = vmatmul.mubr.bf16.gmra.mrb[0].mxu0 %v1160
    %v1287 = vpop.f32.mrb[0].mxu0
    %v1288 = vadd.f32 %v1187, %v1287
    %v1289 = vpop.f32.mrb[0].mxu0
    %v1290 = vpop.f32.mrb[0].mxu0
    %v1291 = vadd.f32 %v1187, %v1290
    %v1292 = vpop.f32.mrb[0].mxu0
    %1293 = vmatprep.mubr.bf16.mxu0 0
    %1294 = vmatmul.mubr.bf16.gmra.mrb[0].mxu0 %v1161
    %v1295 = vpop.f32.mrb[0].mxu0
    %v1296 = vadd.f32 %v1187, %v1295
    %v1297 = vpop.f32.mrb[0].mxu0
    %v1298 = vpop.f32.mrb[0].mxu0
    %v1299 = vadd.f32 %v1187, %v1298
    %v1300 = vpop.f32.mrb[0].mxu0
    %1301 = vmatprep.mubr.bf16.mxu0 0
    %1302 = vmatmul.mubr.bf16.gmra.mrb[0].mxu0 %v1162
    %v1303 = vpop.f32.mrb[0].mxu0
    %v1304 = vadd.f32 %v1187, %v1303
    %v1305 = vpop.f32.mrb[0].mxu0
    %v1306 = vpop.f32.mrb[0].mxu0
    %v1307 = vadd.f32 %v1187, %v1306
    %v1308 = vpop.f32.mrb[0].mxu0
    %1309 = vmatprep.mubr.bf16.mxu0 0
    %1310 = vmatmul.mubr.bf16.gmra.mrb[0].mxu0 %v1163
    %v1311 = vpop.f32.mrb[0].mxu0
    %v1312 = vadd.f32 %v1187, %v1311
    %v1313 = vpop.f32.mrb[0].mxu0
    %v1314 = vpop.f32.mrb[0].mxu0
    %v1315 = vadd.f32 %v1187, %v1314
    %v1316 = vpop.f32.mrb[0].mxu0
    %1317 = vmatprep.mubr.bf16.mxu0 0
    %1318 = vmatmul.mubr.bf16.gmra.mrb[0].mxu0 %v1164
    %v1319 = vpop.f32.mrb[0].mxu0
    %v1320 = vadd.f32 %v1187, %v1319
    %v1321 = vpop.f32.mrb[0].mxu0
    %v1322 = vpop.f32.mrb[0].mxu0
    %v1323 = vadd.f32 %v1187, %v1322
    %v1324 = vpop.f32.mrb[0].mxu0
    %1325 = vmatprep.mubr.bf16.mxu0 0
    %1326 = vmatmul.mubr.bf16.gmra.mrb[0].mxu0 %v1165
    %v1327 = vpop.f32.mrb[0].mxu0
    %v1328 = vadd.f32 %v1187, %v1327
    %v1329 = vpop.f32.mrb[0].mxu0
    %v1330 = vpop.f32.mrb[0].mxu0
    %v1331 = vadd.f32 %v1187, %v1330
    %v1332 = vpop.f32.mrb[0].mxu0
    %1333 = vdwg.mxu0
    %v1334 = vpack.c.bf16 %v1275, %v1272
    %v1335 = vpack.c.bf16 %v1283, %v1280
    %v1336 = vpack.c.bf16 %v1291, %v1288
    %v1337 = vpack.c.bf16 %v1299, %v1296
    %v1338 = vpack.c.bf16 %v1307, %v1304
    %v1339 = vpack.c.bf16 %v1315, %v1312
    %v1340 = vpack.c.bf16 %v1323, %v1320
    %v1341 = vpack.c.bf16 %v1331, %v1328
    %1342 = vst [vmem:[#allocation2] sm:$0xff] %v1334
    %1343 = vst [vmem:[#allocation2 + $0x8] sm:$0xff] %v1335
    %1344 = vst [vmem:[#allocation2 + $0x10] sm:$0xff] %v1336
    %1345 = vst [vmem:[#allocation2 + $0x18] sm:$0xff] %v1337
    %1346 = vst [vmem:[#allocation2 + $0x20] sm:$0xff] %v1338
    %1347 = vst [vmem:[#allocation2 + $0x28] sm:$0xff] %v1339
    %1348 = vst [vmem:[#allocation2 + $0x30] sm:$0xff] %v1340
    %1349 = vst [vmem:[#allocation2 + $0x38] sm:$0xff] %v1341
    %v1350 = vld [vmem:[#allocation2] sm:$0xff]
    %v1351 = vunpack.c.l.bf16 %v1350
    %v1352 = vunpack.c.h.bf16 %v1350
    %v1353 = vld [vmem:[#allocation3] sm:$0xf]
    %v1354 = vld [vmem:[#allocation3 + $0x4] sm:$0xf]
    %v1355 = vld [vmem:[#allocation3 + $0x8] sm:$0xf]
    %v1356 = vld [vmem:[#allocation3 + $0xc] sm:$0xf]
    %v1357 = vld [vmem:[#allocation3 + $0x10] sm:$0xf]
    %v1358 = vld [vmem:[#allocation3 + $0x14] sm:$0xf]
    %v1359 = vld [vmem:[#allocation3 + $0x18] sm:$0xf]
    %v1360 = vld [vmem:[#allocation3 + $0x1c] sm:$0xf]
    %v1361 = vld [vmem:[#allocation3 + $0x20] sm:$0xf]
    %v1362 = vld [vmem:[#allocation3 + $0x24] sm:$0xf]
    %v1363 = vld [vmem:[#allocation3 + $0x28] sm:$0xf]
    %v1364 = vld [vmem:[#allocation3 + $0x2c] sm:$0xf]
    %v1365 = vld [vmem:[#allocation3 + $0x30] sm:$0xf]
    %v1366 = vld [vmem:[#allocation3 + $0x34] sm:$0xf]
    %v1367 = vld [vmem:[#allocation3 + $0x38] sm:$0xf]
    %v1368 = vld [vmem:[#allocation3 + $0x3c] sm:$0xf]
    %v1385 = vunpack.c.l.b16 %v1353
    %v1386 = vunpack.c.l.b16 %v1354
    %v1387 = vunpack.c.l.b16 %v1355
    %v1388 = vunpack.c.l.b16 %v1356
    %v1389 = vunpack.c.l.b16 %v1357
    %v1390 = vunpack.c.l.b16 %v1358
    %v1391 = vunpack.c.l.b16 %v1359
    %v1392 = vunpack.c.l.b16 %v1360
    %v1393 = vunpack.c.l.b16 %v1361
    %v1394 = vunpack.c.l.b16 %v1362
    %v1395 = vunpack.c.l.b16 %v1363
    %v1396 = vunpack.c.l.b16 %v1364
    %v1397 = vunpack.c.l.b16 %v1365
    %v1398 = vunpack.c.l.b16 %v1366
    %v1399 = vunpack.c.l.b16 %v1367
    %v1400 = vunpack.c.l.b16 %v1368
    %v1401 = vpack.c.b16 %v1386, %v1385
    %v1402 = vpack.c.b16 %v1388, %v1387
    %v1403 = vpack.c.b16 %v1390, %v1389
    %v1404 = vpack.c.b16 %v1392, %v1391
    %v1405 = vpack.c.b16 %v1394, %v1393
    %v1406 = vpack.c.b16 %v1396, %v1395
    %v1407 = vpack.c.b16 %v1398, %v1397
    %v1408 = vpack.c.b16 %v1400, %v1399
    %1417 = vmatprep.subr.bf16.mxu0 0
    %1418 = vmatpush1.bf16.msra.mxu0 %v1401
    %1419 = vmatprep.subr.bf16.mxu0 0
    %1420 = vmatpush1.bf16.msra.mxu0 %v1402
    %1421 = vmatprep.subr.bf16.mxu0 0
    %1422 = vmatpush1.bf16.msra.mxu0 %v1403
    %1423 = vmatprep.subr.bf16.mxu0 0
    %1424 = vmatpush1.bf16.msra.mxu0 %v1404
    %1425 = vmatprep.subr.bf16.mxu0 0
    %1426 = vmatpush1.bf16.msra.mxu0 %v1405
    %1427 = vmatprep.subr.bf16.mxu0 0
    %1428 = vmatpush1.bf16.msra.mxu0 %v1406
    %1429 = vmatprep.subr.bf16.mxu0 0
    %1430 = vmatpush1.bf16.msra.mxu0 %v1407
    %1431 = vmatprep.subr.bf16.mxu0 0
    %1432 = vmatpush1.bf16.msra.mxu0 %v1408
    %1433 = vmatprep.subr.bf16.mxu0 0
    %1434 = vmatpush1.bf16.msra.mxu0 0
    %1435 = vmatprep.subr.bf16.mxu0 0
    %1436 = vmatpush1.bf16.msra.mxu0 0
    %1437 = vmatprep.subr.bf16.mxu0 0
    %1438 = vmatpush1.bf16.msra.mxu0 0
    %1439 = vmatprep.subr.bf16.mxu0 0
    %1440 = vmatpush1.bf16.msra.mxu0 0
    %1441 = vmatprep.subr.bf16.mxu0 0
    %1442 = vmatpush1.bf16.msra.mxu0 0
    %1443 = vmatprep.subr.bf16.mxu0 0
    %1444 = vmatpush1.bf16.msra.mxu0 0
    %1445 = vmatprep.subr.bf16.mxu0 0
    %1446 = vmatpush1.bf16.msra.mxu0 0
    %1447 = vmatprep.subr.bf16.mxu0 0
    %1448 = vmatpush1.bf16.msra.mxu0 0
    %1449 = vmatprep.mubr.bf16.mxu0 0
    %1450 = vmatmul.mubr.bf16.gmra.mrb[0].mxu0 0
    %v1451 = vpop.f32.mrb[0].mxu0
    %v1452 = vadd.f32 0.0, %v1451
    %v1453 = vpop.f32.mrb[0].mxu0
    %v1454 = vpop.f32.mrb[0].mxu0
    %v1455 = vadd.f32 0.0, %v1454
    %v1456 = vpop.f32.mrb[0].mxu0
    %1457 = vdwg.mxu0
    %v1458 = vadd.f32 %v1351, %v1452
    %v1459 = vadd.f32 %v1352, %v1455
    %v1460 = vtanh.pop %v1458
    %v1461 = vtanh.pop %v1459
    %v1462 = vld [vmem:[%s353] sm:$0xff]
    %v1463 = vunpack.c.l.bf16 %v1462
    %v1464 = vunpack.c.h.bf16 %v1462
    %v1465 = vpack.c.bf16 %v1461, %v1460
    %1466 = vmatprep.subr.bf16.mxu0 0
    %1467 = vmatpush1.bf16.msra.mxu0 %v1401
    %1468 = vmatprep.subr.bf16.mxu0 0
    %1469 = vmatpush1.bf16.msra.mxu0 %v1402
    %1470 = vmatprep.subr.bf16.mxu0 0
    %1471 = vmatpush1.bf16.msra.mxu0 %v1403
    %1472 = vmatprep.subr.bf16.mxu0 0
    %1473 = vmatpush1.bf16.msra.mxu0 %v1404
    %1474 = vmatprep.subr.bf16.mxu0 0
    %1475 = vmatpush1.bf16.msra.mxu0 %v1405
    %1476 = vmatprep.subr.bf16.mxu0 0
    %1477 = vmatpush1.bf16.msra.mxu0 %v1406
    %1478 = vmatprep.subr.bf16.mxu0 0
    %1479 = vmatpush1.bf16.msra.mxu0 %v1407
    %1480 = vmatprep.subr.bf16.mxu0 0
    %1481 = vmatpush1.bf16.msra.mxu0 %v1408
    %1482 = vmatprep.subr.bf16.mxu0 0
    %1483 = vmatpush1.bf16.msra.mxu0 0
    %1484 = vmatprep.subr.bf16.mxu0 0
    %1485 = vmatpush1.bf16.msra.mxu0 0
    %1486 = vmatprep.subr.bf16.mxu0 0
    %1487 = vmatpush1.bf16.msra.mxu0 0
    %1488 = vmatprep.subr.bf16.mxu0 0
    %1489 = vmatpush1.bf16.msra.mxu0 0
    %1490 = vmatprep.subr.bf16.mxu0 0
    %1491 = vmatpush1.bf16.msra.mxu0 0
    %1492 = vmatprep.subr.bf16.mxu0 0
    %1493 = vmatpush1.bf16.msra.mxu0 0
    %1494 = vmatprep.subr.bf16.mxu0 0
    %1495 = vmatpush1.bf16.msra.mxu0 0
    %1496 = vmatprep.subr.bf16.mxu0 0
    %1497 = vmatpush1.bf16.msra.mxu0 0
    %1498 = vmatprep.mubr.bf16.mxu0 0
    %1499 = vmatmul.mubr.bf16.gmra.mrb[0].mxu0 %v1465
    %v1500 = vpop.f32.mrb[0].mxu0
    %v1501 = vadd.f32 0.0, %v1500
    %v1502 = vpop.f32.mrb[0].mxu0
    %v1503 = vpop.f32.mrb[0].mxu0
    %v1504 = vadd.f32 0.0, %v1503
    %v1505 = vpop.f32.mrb[0].mxu0
    %1506 = vdwg.mxu0
    %v1507 = vadd.f32 %v1463, %v1501
    %v1508 = vadd.f32 %v1464, %v1504
    %v1509 = vtanh.pop %v1507
    %v1510 = vtanh.pop %v1508
    %v1511 = vld [vmem:[%s468] sm:$0xff]
    %v1512 = vunpack.c.l.bf16 %v1511
    %v1513 = vunpack.c.h.bf16 %v1511
    %v1514 = vpack.c.bf16 %v1510, %v1509
    %1515 = vmatprep.subr.bf16.mxu0 0
    %1516 = vmatpush1.bf16.msra.mxu0 %v1401
    %1517 = vmatprep.subr.bf16.mxu0 0
    %1518 = vmatpush1.bf16.msra.mxu0 %v1402
    %1519 = vmatprep.subr.bf16.mxu0 0
    %1520 = vmatpush1.bf16.msra.mxu0 %v1403
    %1521 = vmatprep.subr.bf16.mxu0 0
    %1522 = vmatpush1.bf16.msra.mxu0 %v1404
    %1523 = vmatprep.subr.bf16.mxu0 0
    %1524 = vmatpush1.bf16.msra.mxu0 %v1405
    %1525 = vmatprep.subr.bf16.mxu0 0
    %1526 = vmatpush1.bf16.msra.mxu0 %v1406
    %1527 = vmatprep.subr.bf16.mxu0 0
    %1528 = vmatpush1.bf16.msra.mxu0 %v1407
    %1529 = vmatprep.subr.bf16.mxu0 0
    %1530 = vmatpush1.bf16.msra.mxu0 %v1408
    %1531 = vmatprep.subr.bf16.mxu0 0
    %1532 = vmatpush1.bf16.msra.mxu0 0
    %1533 = vmatprep.subr.bf16.mxu0 0
    %1534 = vmatpush1.bf16.msra.mxu0 0
    %1535 = vmatprep.subr.bf16.mxu0 0
    %1536 = vmatpush1.bf16.msra.mxu0 0
    %1537 = vmatprep.subr.bf16.mxu0 0
    %1538 = vmatpush1.bf16.msra.mxu0 0
    %1539 = vmatprep.subr.bf16.mxu0 0
    %1540 = vmatpush1.bf16.msra.mxu0 0
    %1541 = vmatprep.subr.bf16.mxu0 0
    %1542 = vmatpush1.bf16.msra.mxu0 0
    %1543 = vmatprep.subr.bf16.mxu0 0
    %1544 = vmatpush1.bf16.msra.mxu0 0
    %1545 = vmatprep.subr.bf16.mxu0 0
    %1546 = vmatpush1.bf16.msra.mxu0 0
    %1547 = vmatprep.mubr.bf16.mxu0 0
    %1548 = vmatmul.mubr.bf16.gmra.mrb[0].mxu0 %v1514
    %v1549 = vpop.f32.mrb[0].mxu0
    %v1550 = vadd.f32 0.0, %v1549
    %v1551 = vpop.f32.mrb[0].mxu0
    %v1552 = vpop.f32.mrb[0].mxu0
    %v1553 = vadd.f32 0.0, %v1552
    %v1554 = vpop.f32.mrb[0].mxu0
    %1555 = vdwg.mxu0
    %v1556 = vadd.f32 %v1512, %v1550
    %v1557 = vadd.f32 %v1513, %v1553
    %v1558 = vtanh.pop %v1556
    %v1559 = vtanh.pop %v1557
    %v1560 = vld [vmem:[%s583] sm:$0xff]
    %v1561 = vunpack.c.l.bf16 %v1560
    %v1562 = vunpack.c.h.bf16 %v1560
    %v1563 = vpack.c.bf16 %v1559, %v1558
    %1564 = vmatprep.subr.bf16.mxu0 0
    %1565 = vmatpush1.bf16.msra.mxu0 %v1401
    %1566 = vmatprep.subr.bf16.mxu0 0
    %1567 = vmatpush1.bf16.msra.mxu0 %v1402
    %1568 = vmatprep.subr.bf16.mxu0 0
    %1569 = vmatpush1.bf16.msra.mxu0 %v1403
    %1570 = vmatprep.subr.bf16.mxu0 0
    %1571 = vmatpush1.bf16.msra.mxu0 %v1404
    %1572 = vmatprep.subr.bf16.mxu0 0
    %1573 = vmatpush1.bf16.msra.mxu0 %v1405
    %1574 = vmatprep.subr.bf16.mxu0 0
    %1575 = vmatpush1.bf16.msra.mxu0 %v1406
    %1576 = vmatprep.subr.bf16.mxu0 0
    %1577 = vmatpush1.bf16.msra.mxu0 %v1407
    %1578 = vmatprep.subr.bf16.mxu0 0
    %1579 = vmatpush1.bf16.msra.mxu0 %v1408
    %1580 = vmatprep.subr.bf16.mxu0 0
    %1581 = vmatpush1.bf16.msra.mxu0 0
    %1582 = vmatprep.subr.bf16.mxu0 0
    %1583 = vmatpush1.bf16.msra.mxu0 0
    %1584 = vmatprep.subr.bf16.mxu0 0
    %1585 = vmatpush1.bf16.msra.mxu0 0
    %1586 = vmatprep.subr.bf16.mxu0 0
    %1587 = vmatpush1.bf16.msra.mxu0 0
    %1588 = vmatprep.subr.bf16.mxu0 0
    %1589 = vmatpush1.bf16.msra.mxu0 0
    %1590 = vmatprep.subr.bf16.mxu0 0
    %1591 = vmatpush1.bf16.msra.mxu0 0
    %1592 = vmatprep.subr.bf16.mxu0 0
    %1593 = vmatpush1.bf16.msra.mxu0 0
    %1594 = vmatprep.subr.bf16.mxu0 0
    %1595 = vmatpush1.bf16.msra.mxu0 0
    %1596 = vmatprep.mubr.bf16.mxu0 0
    %1597 = vmatmul.mubr.bf16.gmra.mrb[0].mxu0 %v1563
    %v1598 = vpop.f32.mrb[0].mxu0
    %v1599 = vadd.f32 0.0, %v1598
    %v1600 = vpop.f32.mrb[0].mxu0
    %v1601 = vpop.f32.mrb[0].mxu0
    %v1602 = vadd.f32 0.0, %v1601
    %v1603 = vpop.f32.mrb[0].mxu0
    %1604 = vdwg.mxu0
    %v1605 = vadd.f32 %v1561, %v1599
    %v1606 = vadd.f32 %v1562, %v1602
    %v1607 = vtanh.pop %v1605
    %v1608 = vtanh.pop %v1606
    %v1609 = vld [vmem:[%s698] sm:$0xff]
    %v1610 = vunpack.c.l.bf16 %v1609
    %v1611 = vunpack.c.h.bf16 %v1609
    %v1612 = vpack.c.bf16 %v1608, %v1607
    %1613 = vmatprep.subr.bf16.mxu0 0
    %1614 = vmatpush1.bf16.msra.mxu0 %v1401
    %1615 = vmatprep.subr.bf16.mxu0 0
    %1616 = vmatpush1.bf16.msra.mxu0 %v1402
    %1617 = vmatprep.subr.bf16.mxu0 0
    %1618 = vmatpush1.bf16.msra.mxu0 %v1403
    %1619 = vmatprep.subr.bf16.mxu0 0
    %1620 = vmatpush1.bf16.msra.mxu0 %v1404
    %1621 = vmatprep.subr.bf16.mxu0 0
    %1622 = vmatpush1.bf16.msra.mxu0 %v1405
    %1623 = vmatprep.subr.bf16.mxu0 0
    %1624 = vmatpush1.bf16.msra.mxu0 %v1406
    %1625 = vmatprep.subr.bf16.mxu0 0
    %1626 = vmatpush1.bf16.msra.mxu0 %v1407
    %1627 = vmatprep.subr.bf16.mxu0 0
    %1628 = vmatpush1.bf16.msra.mxu0 %v1408
    %1629 = vmatprep.subr.bf16.mxu0 0
    %1630 = vmatpush1.bf16.msra.mxu0 0
    %1631 = vmatprep.subr.bf16.mxu0 0
    %1632 = vmatpush1.bf16.msra.mxu0 0
    %1633 = vmatprep.subr.bf16.mxu0 0
    %1634 = vmatpush1.bf16.msra.mxu0 0
    %1635 = vmatprep.subr.bf16.mxu0 0
    %1636 = vmatpush1.bf16.msra.mxu0 0
    %1637 = vmatprep.subr.bf16.mxu0 0
    %1638 = vmatpush1.bf16.msra.mxu0 0
    %1639 = vmatprep.subr.bf16.mxu0 0
    %1640 = vmatpush1.bf16.msra.mxu0 0
    %1641 = vmatprep.subr.bf16.mxu0 0
    %1642 = vmatpush1.bf16.msra.mxu0 0
    %1643 = vmatprep.subr.bf16.mxu0 0
    %1644 = vmatpush1.bf16.msra.mxu0 0
    %1645 = vmatprep.mubr.bf16.mxu0 0
    %1646 = vmatmul.mubr.bf16.gmra.mrb[0].mxu0 %v1612
    %v1647 = vpop.f32.mrb[0].mxu0
    %v1648 = vadd.f32 0.0, %v1647
    %v1649 = vpop.f32.mrb[0].mxu0
    %v1650 = vpop.f32.mrb[0].mxu0
    %v1651 = vadd.f32 0.0, %v1650
    %v1652 = vpop.f32.mrb[0].mxu0
    %1653 = vdwg.mxu0
    %v1654 = vadd.f32 %v1610, %v1648
    %v1655 = vadd.f32 %v1611, %v1651
    %v1656 = vtanh.pop %v1654
    %v1657 = vtanh.pop %v1655
    %v1658 = vld [vmem:[%s813] sm:$0xff]
    %v1659 = vunpack.c.l.bf16 %v1658
    %v1660 = vunpack.c.h.bf16 %v1658
    %v1661 = vpack.c.bf16 %v1657, %v1656
    %1662 = vmatprep.subr.bf16.mxu0 0
    %1663 = vmatpush1.bf16.msra.mxu0 %v1401
    %1664 = vmatprep.subr.bf16.mxu0 0
    %1665 = vmatpush1.bf16.msra.mxu0 %v1402
    %1666 = vmatprep.subr.bf16.mxu0 0
    %1667 = vmatpush1.bf16.msra.mxu0 %v1403
    %1668 = vmatprep.subr.bf16.mxu0 0
    %1669 = vmatpush1.bf16.msra.mxu0 %v1404
    %1670 = vmatprep.subr.bf16.mxu0 0
    %1671 = vmatpush1.bf16.msra.mxu0 %v1405
    %1672 = vmatprep.subr.bf16.mxu0 0
    %1673 = vmatpush1.bf16.msra.mxu0 %v1406
    %1674 = vmatprep.subr.bf16.mxu0 0
    %1675 = vmatpush1.bf16.msra.mxu0 %v1407
    %1676 = vmatprep.subr.bf16.mxu0 0
    %1677 = vmatpush1.bf16.msra.mxu0 %v1408
    %1678 = vmatprep.subr.bf16.mxu0 0
    %1679 = vmatpush1.bf16.msra.mxu0 0
    %1680 = vmatprep.subr.bf16.mxu0 0
    %1681 = vmatpush1.bf16.msra.mxu0 0
    %1682 = vmatprep.subr.bf16.mxu0 0
    %1683 = vmatpush1.bf16.msra.mxu0 0
    %1684 = vmatprep.subr.bf16.mxu0 0
    %1685 = vmatpush1.bf16.msra.mxu0 0
    %1686 = vmatprep.subr.bf16.mxu0 0
    %1687 = vmatpush1.bf16.msra.mxu0 0
    %1688 = vmatprep.subr.bf16.mxu0 0
    %1689 = vmatpush1.bf16.msra.mxu0 0
    %1690 = vmatprep.subr.bf16.mxu0 0
    %1691 = vmatpush1.bf16.msra.mxu0 0
    %1692 = vmatprep.subr.bf16.mxu0 0
    %1693 = vmatpush1.bf16.msra.mxu0 0
    %1694 = vmatprep.mubr.bf16.mxu0 0
    %1695 = vmatmul.mubr.bf16.gmra.mrb[0].mxu0 %v1661
    %v1696 = vpop.f32.mrb[0].mxu0
    %v1697 = vadd.f32 0.0, %v1696
    %v1698 = vpop.f32.mrb[0].mxu0
    %v1699 = vpop.f32.mrb[0].mxu0
    %v1700 = vadd.f32 0.0, %v1699
    %v1701 = vpop.f32.mrb[0].mxu0
    %1702 = vdwg.mxu0
    %v1703 = vadd.f32 %v1659, %v1697
    %v1704 = vadd.f32 %v1660, %v1700
    %v1705 = vtanh.pop %v1703
    %v1706 = vtanh.pop %v1704
    %v1707 = vld [vmem:[%s928] sm:$0xff]
    %v1708 = vunpack.c.l.bf16 %v1707
    %v1709 = vunpack.c.h.bf16 %v1707
    %v1710 = vpack.c.bf16 %v1706, %v1705
    %1711 = vmatprep.subr.bf16.mxu0 0
    %1712 = vmatpush1.bf16.msra.mxu0 %v1401
    %1713 = vmatprep.subr.bf16.mxu0 0
    %1714 = vmatpush1.bf16.msra.mxu0 %v1402
    %1715 = vmatprep.subr.bf16.mxu0 0
    %1716 = vmatpush1.bf16.msra.mxu0 %v1403
    %1717 = vmatprep.subr.bf16.mxu0 0
    %1718 = vmatpush1.bf16.msra.mxu0 %v1404
    %1719 = vmatprep.subr.bf16.mxu0 0
    %1720 = vmatpush1.bf16.msra.mxu0 %v1405
    %1721 = vmatprep.subr.bf16.mxu0 0
    %1722 = vmatpush1.bf16.msra.mxu0 %v1406
    %1723 = vmatprep.subr.bf16.mxu0 0
    %1724 = vmatpush1.bf16.msra.mxu0 %v1407
    %1725 = vmatprep.subr.bf16.mxu0 0
    %1726 = vmatpush1.bf16.msra.mxu0 %v1408
    %1727 = vmatprep.subr.bf16.mxu0 0
    %1728 = vmatpush1.bf16.msra.mxu0 0
    %1729 = vmatprep.subr.bf16.mxu0 0
    %1730 = vmatpush1.bf16.msra.mxu0 0
    %1731 = vmatprep.subr.bf16.mxu0 0
    %1732 = vmatpush1.bf16.msra.mxu0 0
    %1733 = vmatprep.subr.bf16.mxu0 0
    %1734 = vmatpush1.bf16.msra.mxu0 0
    %1735 = vmatprep.subr.bf16.mxu0 0
    %1736 = vmatpush1.bf16.msra.mxu0 0
    %1737 = vmatprep.subr.bf16.mxu0 0
    %1738 = vmatpush1.bf16.msra.mxu0 0
    %1739 = vmatprep.subr.bf16.mxu0 0
    %1740 = vmatpush1.bf16.msra.mxu0 0
    %1741 = vmatprep.subr.bf16.mxu0 0
    %1742 = vmatpush1.bf16.msra.mxu0 0
    %1743 = vmatprep.mubr.bf16.mxu0 0
    %1744 = vmatmul.mubr.bf16.gmra.mrb[0].mxu0 %v1710
    %v1745 = vpop.f32.mrb[0].mxu0
    %v1746 = vadd.f32 0.0, %v1745
    %v1747 = vpop.f32.mrb[0].mxu0
    %v1748 = vpop.f32.mrb[0].mxu0
    %v1749 = vadd.f32 0.0, %v1748
    %v1750 = vpop.f32.mrb[0].mxu0
    %1751 = vdwg.mxu0
    %v1752 = vadd.f32 %v1708, %v1746
    %v1753 = vadd.f32 %v1709, %v1749
    %v1754 = vtanh.pop %v1752
    %v1755 = vtanh.pop %v1753
    %v1756 = vld [vmem:[%s1043] sm:$0xff]
    %v1757 = vunpack.c.l.bf16 %v1756
    %v1758 = vunpack.c.h.bf16 %v1756
    %v1759 = vpack.c.bf16 %v1755, %v1754
    %1760 = vmatprep.subr.bf16.mxu0 0
    %1761 = vmatpush1.bf16.msra.mxu0 %v1401
    %1762 = vmatprep.subr.bf16.mxu0 0
    %1763 = vmatpush1.bf16.msra.mxu0 %v1402
    %1764 = vmatprep.subr.bf16.mxu0 0
    %1765 = vmatpush1.bf16.msra.mxu0 %v1403
    %1766 = vmatprep.subr.bf16.mxu0 0
    %1767 = vmatpush1.bf16.msra.mxu0 %v1404
    %1768 = vmatprep.subr.bf16.mxu0 0
    %1769 = vmatpush1.bf16.msra.mxu0 %v1405
    %1770 = vmatprep.subr.bf16.mxu0 0
    %1771 = vmatpush1.bf16.msra.mxu0 %v1406
    %1772 = vmatprep.subr.bf16.mxu0 0
    %1773 = vmatpush1.bf16.msra.mxu0 %v1407
    %1774 = vmatprep.subr.bf16.mxu0 0
    %1775 = vmatpush1.bf16.msra.mxu0 %v1408
    %1776 = vmatprep.subr.bf16.mxu0 0
    %1777 = vmatpush1.bf16.msra.mxu0 0
    %1778 = vmatprep.subr.bf16.mxu0 0
    %1779 = vmatpush1.bf16.msra.mxu0 0
    %1780 = vmatprep.subr.bf16.mxu0 0
    %1781 = vmatpush1.bf16.msra.mxu0 0
    %1782 = vmatprep.subr.bf16.mxu0 0
    %1783 = vmatpush1.bf16.msra.mxu0 0
    %1784 = vmatprep.subr.bf16.mxu0 0
    %1785 = vmatpush1.bf16.msra.mxu0 0
    %1786 = vmatprep.subr.bf16.mxu0 0
    %1787 = vmatpush1.bf16.msra.mxu0 0
    %1788 = vmatprep.subr.bf16.mxu0 0
    %1789 = vmatpush1.bf16.msra.mxu0 0
    %1790 = vmatprep.subr.bf16.mxu0 0
    %1791 = vmatpush1.bf16.msra.mxu0 0
    %1792 = vmatprep.mubr.bf16.mxu0 0
    %1793 = vmatmul.mubr.bf16.gmra.mrb[0].mxu0 %v1759
    %v1794 = vpop.f32.mrb[0].mxu0
    %v1795 = vadd.f32 0.0, %v1794
    %v1796 = vpop.f32.mrb[0].mxu0
    %v1797 = vpop.f32.mrb[0].mxu0
    %v1798 = vadd.f32 0.0, %v1797
    %v1799 = vpop.f32.mrb[0].mxu0
    %1800 = vdwg.mxu0
    %v1801 = vadd.f32 %v1757, %v1795
    %v1802 = vadd.f32 %v1758, %v1798
    %v1803 = vtanh.pop %v1801
    %v1804 = vtanh.pop %v1802
    %v1805 = vpack.c.bf16 %v1804, %v1803
    %v1806 = vld [vmem:[#allocation6] sm:$0xf]
    %v1807 = vld [vmem:[#allocation6 + $0x4] sm:$0xf]
    %v1808 = vld [vmem:[#allocation6 + $0x8] sm:$0xf]
    %v1809 = vld [vmem:[#allocation6 + $0xc] sm:$0xf]
    %v1810 = vld [vmem:[#allocation6 + $0x10] sm:$0xf]
    %v1811 = vld [vmem:[#allocation6 + $0x14] sm:$0xf]
    %v1812 = vld [vmem:[#allocation6 + $0x18] sm:$0xf]
    %v1813 = vld [vmem:[#allocation6 + $0x1c] sm:$0xf]
    %v1814 = vld [vmem:[#allocation6 + $0x20] sm:$0xf]
    %v1815 = vld [vmem:[#allocation6 + $0x24] sm:$0xf]
    %v1816 = vld [vmem:[#allocation6 + $0x28] sm:$0xf]
    %v1817 = vld [vmem:[#allocation6 + $0x2c] sm:$0xf]
    %v1818 = vld [vmem:[#allocation6 + $0x30] sm:$0xf]
    %v1819 = vld [vmem:[#allocation6 + $0x34] sm:$0xf]
    %v1820 = vld [vmem:[#allocation6 + $0x38] sm:$0xf]
    %v1821 = vld [vmem:[#allocation6 + $0x3c] sm:$0xf]
    %v1822 = vld [vmem:[%s8] sm:$0x1]
    %v1824 = vlaneseq
    %v1825 = vshrl.u32 %v1824, 7
    %v1826 = vsub.s32 0, %v1825
    %v1827 = vrot.slane %v1822, %v1826
    %v1845 = vunpack.c.l.b16 %v1806
    %v1846 = vunpack.c.l.b16 %v1807
    %v1847 = vunpack.c.l.b16 %v1808
    %v1848 = vunpack.c.l.b16 %v1809
    %v1849 = vunpack.c.l.b16 %v1810
    %v1850 = vunpack.c.l.b16 %v1811
    %v1851 = vunpack.c.l.b16 %v1812
    %v1852 = vunpack.c.l.b16 %v1813
    %v1853 = vunpack.c.l.b16 %v1814
    %v1854 = vunpack.c.l.b16 %v1815
    %v1855 = vunpack.c.l.b16 %v1816
    %v1856 = vunpack.c.l.b16 %v1817
    %v1857 = vunpack.c.l.b16 %v1818
    %v1858 = vunpack.c.l.b16 %v1819
    %v1859 = vunpack.c.l.b16 %v1820
    %v1860 = vunpack.c.l.b16 %v1821
    %v1861 = vpack.c.b16 %v1846, %v1845
    %v1862 = vpack.c.b16 %v1848, %v1847
    %v1863 = vpack.c.b16 %v1850, %v1849
    %v1864 = vpack.c.b16 %v1852, %v1851
    %v1865 = vpack.c.b16 %v1854, %v1853
    %v1866 = vpack.c.b16 %v1856, %v1855
    %v1867 = vpack.c.b16 %v1858, %v1857
    %v1868 = vpack.c.b16 %v1860, %v1859
    %1877 = vmatprep.subr.bf16.mxu0 0
    %1878 = vmatpush1.bf16.msra.mxu0 %v1861
    %1879 = vmatprep.subr.bf16.mxu0 0
    %1880 = vmatpush1.bf16.msra.mxu0 %v1862
    %1881 = vmatprep.subr.bf16.mxu0 0
    %1882 = vmatpush1.bf16.msra.mxu0 %v1863
    %1883 = vmatprep.subr.bf16.mxu0 0
    %1884 = vmatpush1.bf16.msra.mxu0 %v1864
    %1885 = vmatprep.subr.bf16.mxu0 0
    %1886 = vmatpush1.bf16.msra.mxu0 %v1865
    %1887 = vmatprep.subr.bf16.mxu0 0
    %1888 = vmatpush1.bf16.msra.mxu0 %v1866
    %1889 = vmatprep.subr.bf16.mxu0 0
    %1890 = vmatpush1.bf16.msra.mxu0 %v1867
    %1891 = vmatprep.subr.bf16.mxu0 0
    %1892 = vmatpush1.bf16.msra.mxu0 %v1868
    %1893 = vmatprep.subr.bf16.mxu0 0
    %1894 = vmatpush1.bf16.msra.mxu0 0
    %1895 = vmatprep.subr.bf16.mxu0 0
    %1896 = vmatpush1.bf16.msra.mxu0 0
    %1897 = vmatprep.subr.bf16.mxu0 0
    %1898 = vmatpush1.bf16.msra.mxu0 0
    %1899 = vmatprep.subr.bf16.mxu0 0
    %1900 = vmatpush1.bf16.msra.mxu0 0
    %1901 = vmatprep.subr.bf16.mxu0 0
    %1902 = vmatpush1.bf16.msra.mxu0 0
    %1903 = vmatprep.subr.bf16.mxu0 0
    %1904 = vmatpush1.bf16.msra.mxu0 0
    %1905 = vmatprep.subr.bf16.mxu0 0
    %1906 = vmatpush1.bf16.msra.mxu0 0
    %1907 = vmatprep.subr.bf16.mxu0 0
    %1908 = vmatpush1.bf16.msra.mxu0 0
    %1909 = vmatprep.mubr.bf16.mxu0 0
    %1910 = vmatmul.mubr.bf16.gmra.mrb[0].mxu0 %v1805
    %v1911 = vpop.f32.mrb[0].mxu0
    %v1912 = vadd.f32 %v1827, %v1911
    %v1913 = vpop.f32.mrb[0].mxu0
    %v1914 = vpop.f32.mrb[0].mxu0
    %v1915 = vadd.f32 %v1827, %v1914
    %v1916 = vpop.f32.mrb[0].mxu0
    %1917 = vdwg.mxu0
    %1918 = vst [vmem:[#allocation8] sm:$0xff] %v1912
    %1919 = vst [vmem:[#allocation8 + $0x8] sm:$0xff] %v1915
    // Predicated region
    $region46: #{_fused_forward.1} parent=1 // pred_check
      _
    $region47: #{_fused_forward.1} parent=1 // pred_check_branch
      %1921 = sbr.rel (0) target = $region49
    $region48: #{_fused_forward.1} parent=1 // pred_region
      %s1923 = ssub.s32 256, 256
      %1924 = vsyncadd [#allocation5], %s1923
      %s1925 = sshll.u32 [#allocation8], 4
      %s1926 = int_to_ptr.vmem [resolvable:$true] %s1925
      %1931 = dma.vmem_to_hbm [thread:$0]  %s1926, 256, %s9, [#allocation5], 128, 128, 8
    $region49: #{_fused_forward.1} parent=1 // pred_fallthru
      _
    // Predicated region
    $region50: #{_fused_forward.1} parent=1 // pred_check
      _
    $region51: #{_fused_forward.1} parent=1 // pred_check_branch
      %1933 = sbr.rel (0) target = $region53
    $region52: #{_fused_forward.1} parent=1 // pred_region
      %1934 = dma.done [#allocation5], 256
    $region53: #{_fused_forward.1} parent=1 // pred_fallthru
      _
    %1935 = vsyncpa [#allocation4], 1
    %1936 = vsyncpa [#allocation7], 1
    %1937 = vsyncpa [#allocation5], 1

</llo_original>
